<compile_context>
chip_gen: v7x
topology: tpu7x:2x2x1
jax: 0.10.0
libtpu: 0.0.40
codegen_flags: <defaults>
</compile_context>

<pallas_src>
import numpy as np
import jax
import jax.numpy as jnp
from jax.experimental import pallas as pl
from jax.experimental.pallas import tpu as pltpu


def _round_up(x: int, m: int) -> int:
    return ((x + m - 1) // m) * m


def _interp_kernel(base_lo_ref, base_hi_ref, flow_lo_ref, flow_hi_ref, lidx_ref, out_ref):
    """Nearest-neighbour gather + transpose as two one-hot MXU matmuls.

    base_lo/base_hi : (n_t,)   i32 SMEM  per-tile daily block indices (index_maps only)
    flow_lo         : (tk, td) f32       daily window, block base_lo[j]
    flow_hi         : (tk, td) f32       daily window, block base_hi[j] (== lo or lo+1)
    lidx            : (1, tt)  i32       source index local to base_lo[j]*tk per hourly col
    out             : (td, tt) f32       out[d, t] = daily_flow[lidx[t], d]
    """
    del base_lo_ref, base_hi_ref                     # consumed by the index_maps only
    tk = flow_lo_ref.shape[0]
    lidx = lidx_ref[...]                                              # (1, tt)
    k_iota = jax.lax.broadcasted_iota(jnp.int32, (tk, lidx.shape[1]), 0)
    onehot_lo = (k_iota == lidx).astype(jnp.float32)                  # local idx in [0, tk)
    onehot_hi = ((k_iota + tk) == lidx).astype(jnp.float32)           # local idx in [tk, 2tk)
    dn = (((0,), (0,)), ((), ()))                                     # contract sublane axis
    acc = jax.lax.dot_general(flow_lo_ref[...], onehot_lo, dimension_numbers=dn,
                              precision=jax.lax.Precision.HIGHEST,
                              preferred_element_type=jnp.float32)
    acc = acc + jax.lax.dot_general(flow_hi_ref[...], onehot_hi, dimension_numbers=dn,
                                    precision=jax.lax.Precision.HIGHEST,
                                    preferred_element_type=jnp.float32)
    out_ref[...] = acc


def streamflow_forward(qr, divide_ids_store, divide_ids_wanted,
                       src_times, hourly_times, *, tt=512, td_max=512):
    """JAX/Pallas equivalent of StreamflowReader.forward.

    qr:                (T_src, D_all) f32 -- 'Qr' variable, axes (time, divide_id)
    divide_ids_store:  (D_all,)           -- divide ids present in the store
    divide_ids_wanted: (D_w,)             -- hydrofabric.divide_ids
    src_times:         (T_src,)           -- daily time coordinates (numerical_time_range)
    hourly_times:      (T_h,)             -- batch_hourly_time_range targets
    Returns {'streamflow': (D_sel, T_h) float32}
    """
    # ---------------- host-side glue (mirrors the module's numpy/xarray indexing) -------
    divide_ids_store = np.asarray(divide_ids_store)
    divide_ids_wanted = np.asarray(divide_ids_wanted)
    # .isel(divide_id=np.where(np.isin(...))[0]) -> ascending store order (module behaviour)
    divide_indices = np.where(np.isin(divide_ids_store, divide_ids_wanted))[0]
    if divide_indices.size == 0:
        raise IndexError("index out of bounds: no requested divide ids found in the store")

    # Nearest source index per hourly target: float64 searchsorted (no dense |src-tgt|
    # matrix, no f32 epoch-precision loss).  Out-of-range targets clamp to the endpoints.
    src = np.asarray(src_times, dtype=np.float64)
    tgt = np.asarray(hourly_times, dtype=np.float64)
    pos = np.clip(np.searchsorted(src, tgt), 1, src.shape[0] - 1)
    left, right = src[pos - 1], src[pos]
    time_idx = np.where((tgt - left) <= (right - tgt), pos - 1, pos).astype(np.int64)

    t_src = int(src.shape[0])
    t_h = int(tgt.shape[0])
    d_sel = int(divide_indices.shape[0])

    # ---------------- tile geometry -----------------------------------------------------
    # Hourly tile: lane-dense, capped at 1024 (v5e f32 MXU / v7x VMEM guidance).
    tt = int(min(max(int(tt), 128), 1024))
    tt = min(_round_up(tt, 128), max(128, _round_up(t_h, 128)))
    n_t = int(pl.cdiv(t_h, tt))
    t_h_pad = n_t * tt

    tidx_pad = np.concatenate(
        [time_idx, np.full(t_h_pad - t_h, time_idx[-1], dtype=np.int64)])
    tiles = tidx_pad.reshape(n_t, tt)
    lo = tiles.min(axis=1)
    hi = tiles.max(axis=1)
    # Per-tile daily window depth = max unaligned span, rounded to the sublane (8).
    # NOTE: very irregular hourly_times can inflate tk toward t_src (still correct,
    # just more VMEM/FLOPs -- degrades to a single full-window fetch).
    tk = int(_round_up(int((hi - lo + 1).max()), 8))
    base_lo = (lo // tk).astype(np.int32)
    base_hi = (hi // tk).astype(np.int32)                  # == base_lo, or base_lo + 1
    lidx = (tiles - base_lo.astype(np.int64)[:, None] * tk).reshape(1, t_h_pad)
    lidx = lidx.astype(np.int32)                           # always in [0, 2*tk)

    # divide-axis tiling: full dim when it fits, else 512-wide (multiple of 128) blocks;
    # the ragged last block is masked on write by Pallas (no reduction over divides).
    td = d_sel if d_sel <= td_max else td_max
    n_d = int(pl.cdiv(d_sel, td))

    # ---------------- device data prep: one column gather + one time-axis pad -----------
    t_src_pad = _round_up(t_src, tk)          # every fetched (tk, td) time-block in-bounds
    flow = jnp.take(jnp.asarray(qr, jnp.float32), jnp.asarray(divide_indices), axis=1)
    flow = jnp.pad(flow, ((0, t_src_pad - t_src), (0, 0)))   # (t_src_pad, d_sel)

    cost = pl.CostEstimate(
        flops=int(2 * (2 * tk) * (n_d * td) * t_h_pad),
        transcendentals=0,
        bytes_accessed=int(4 * (d_sel * t_h + n_d * n_t * 2 * tk * td + t_h_pad)),
    )

    out = pl.pallas_call(
        _interp_kernel,
        out_shape=jax.ShapeDtypeStruct((d_sel, t_h), jnp.float32),   # exact shape, no slice
        grid_spec=pltpu.PrefetchScalarGridSpec(
            num_scalar_prefetch=2,                 # per-tile lo/hi daily block indices (SMEM)
            grid=(n_d, n_t),
            in_specs=[
                pl.BlockSpec((tk, td), lambda i, j, blo, bhi: (blo[j], i)),   # window lo
                pl.BlockSpec((tk, td), lambda i, j, blo, bhi: (bhi[j], i)),   # window hi
                pl.BlockSpec((1, tt), lambda i, j, blo, bhi: (0, j)),         # local idx
            ],
            out_specs=pl.BlockSpec((td, tt), lambda i, j, blo, bhi: (i, j)),
        ),
        compiler_params=pltpu.CompilerParams(
            dimension_semantics=("parallel", "parallel"),
            vmem_limit_bytes=48 * 1024 * 1024,
        ),
        cost_estimate=cost,
    )(jnp.asarray(base_lo), jnp.asarray(base_hi), flow, flow, jnp.asarray(lidx))

    return {"streamflow": out}


if __name__ == "__main__":
    key = jax.random.PRNGKey(0)
    T_SRC, D_ALL, D_SEL = 32, 12, 8
    T_HOURLY = 24 * T_SRC                                        # 768 hourly targets

    qr = jax.random.uniform(key, (T_SRC, D_ALL), dtype=jnp.float32) * 100.0
    divide_ids_store = np.arange(1000, 1000 + D_ALL)             # ids in the "store"
    divide_ids_wanted = divide_ids_store[2:2 + D_SEL]            # hydrofabric.divide_ids
    src_times = np.arange(T_SRC, dtype=np.float64)               # daily coordinates
    hourly_times = np.arange(T_HOURLY, dtype=np.float64) / 24.0  # hourly targets

    result = streamflow_forward(qr, divide_ids_store, divide_ids_wanted,
                                src_times, hourly_times, tt=512)
    flow = jax.block_until_ready(result["streamflow"])
    assert flow.shape == (D_SEL, T_HOURLY) and flow.dtype == jnp.float32

    # pure-numpy reference of the forward semantics
    div_idx = np.where(np.isin(divide_ids_store, divide_ids_wanted))[0]
    sel = np.asarray(qr)[:, div_idx]                             # (T_src, D_sel)
    tidx = np.argmin(np.abs(src_times[None, :] - hourly_times[:, None]), axis=1)
    ref = sel[tidx, :].astype(np.float32).T                      # (D_sel, T_h)
    np.testing.assert_allclose(np.asarray(flow), ref, rtol=0.0, atol=1e-6)

    print("KERNEL_OK")
</pallas_src>

<mosaic_0001>
module attributes {stable_mosaic.version = 11 : i64} {
  func.func @_interp_kernel(%arg0: i32, %arg1: i32, %arg2: memref<2xi32, #tpu.memory_space<smem>>, %arg3: memref<2xi32, #tpu.memory_space<smem>>, %arg4: memref<24x8xf32, #tpu.memory_space<vmem>>, %arg5: memref<24x8xf32, #tpu.memory_space<vmem>>, %arg6: memref<1x512xi32, #tpu.memory_space<vmem>>, %arg7: memref<8x512xf32, #tpu.memory_space<vmem>>) attributes {dimension_semantics = [#tpu.dimension_semantics<parallel>, #tpu.dimension_semantics<parallel>], iteration_bounds = array<i64: 1, 2>, scalar_prefetch = 2 : i64, scratch_operands = 0 : i64, tpu.core_type = #tpu.core_type<tc>, window_params = [{transform_indices = @transform_0, window_bounds = array<i64: 24, 8>}, {transform_indices = @transform_1, window_bounds = array<i64: 24, 8>}, {transform_indices = @transform_2, window_bounds = array<i64: 1, 512>}, {transform_indices = @transform_3, window_bounds = array<i64: 8, 512>}]} {
    %c0 = arith.constant 0 : index
    %c0_0 = arith.constant 0 : index
    %0 = vector.load %arg6[%c0, %c0_0] : memref<1x512xi32, #tpu.memory_space<vmem>>, vector<1x512xi32>
    %1 = tpu.iota {dimensions = array<i32: 0>} : vector<24x512xi32>
    %2 = vector.broadcast %0 : vector<1x512xi32> to vector<24x512xi32>
    %3 = arith.cmpi eq, %1, %2 : vector<24x512xi32>
    %4 = arith.extui %3 : vector<24x512xi1> to vector<24x512xi32>
    %5 = arith.sitofp %4 : vector<24x512xi32> to vector<24x512xf32>
    %c24_i32 = arith.constant 24 : i32
    %6 = vector.broadcast %c24_i32 : i32 to vector<24x512xi32>
    %7 = arith.addi %1, %6 : vector<24x512xi32>
    %8 = vector.broadcast %0 : vector<1x512xi32> to vector<24x512xi32>
    %9 = arith.cmpi eq, %7, %8 : vector<24x512xi32>
    %10 = arith.extui %9 : vector<24x512xi1> to vector<24x512xi32>
    %11 = arith.sitofp %10 : vector<24x512xi32> to vector<24x512xf32>
    %c0_1 = arith.constant 0 : index
    %c0_2 = arith.constant 0 : index
    %12 = vector.load %arg4[%c0_1, %c0_2] : memref<24x8xf32, #tpu.memory_space<vmem>>, vector<24x8xf32>
    %cst = arith.constant dense<0.000000e+00> : vector<8x512xf32>
    %13 = tpu.matmul %12, %5, %cst {dimension_numbers = #tpu.dot_dimension_numbers<[0], [0], [1], [1], [0, 1, 1, 1], [], []>, precision = #tpu.contract_precision<fp32>} : vector<24x8xf32>, vector<24x512xf32>, vector<8x512xf32> -> vector<8x512xf32>
    %c0_3 = arith.constant 0 : index
    %c0_4 = arith.constant 0 : index
    %14 = vector.load %arg5[%c0_3, %c0_4] : memref<24x8xf32, #tpu.memory_space<vmem>>, vector<24x8xf32>
    %cst_5 = arith.constant dense<0.000000e+00> : vector<8x512xf32>
    %15 = tpu.matmul %14, %11, %cst_5 {dimension_numbers = #tpu.dot_dimension_numbers<[0], [0], [1], [1], [0, 1, 1, 1], [], []>, precision = #tpu.contract_precision<fp32>} : vector<24x8xf32>, vector<24x512xf32>, vector<8x512xf32> -> vector<8x512xf32>
    %16 = arith.addf %13, %15 : vector<8x512xf32>
    %c0_6 = arith.constant 0 : index
    %c0_7 = arith.constant 0 : index
    %17 = vector.load %arg7[%c0_6, %c0_7] : memref<8x512xf32, #tpu.memory_space<vmem>>, vector<8x512xf32>
    tpu.vector_store %arg7[%c0_6, %c0_7], %16 {strides = array<i32>} : memref<8x512xf32, #tpu.memory_space<vmem>>, vector<8x512xf32>,
    return
  }
  func.func @transform_0(%arg0: i32, %arg1: i32, %arg2: memref<2xi32, #tpu.memory_space<smem>>, %arg3: memref<2xi32, #tpu.memory_space<smem>>) -> (i32, i32) {
    %0 = arith.index_cast %arg1 : i32 to index
    %1 = memref.load %arg2[%0] : memref<2xi32, #tpu.memory_space<smem>>
    %c0_i32 = arith.constant 0 : i32
    return %1, %arg0 : i32, i32
  }
  func.func @transform_1(%arg0: i32, %arg1: i32, %arg2: memref<2xi32, #tpu.memory_space<smem>>, %arg3: memref<2xi32, #tpu.memory_space<smem>>) -> (i32, i32) {
    %0 = arith.index_cast %arg1 : i32 to index
    %1 = memref.load %arg3[%0] : memref<2xi32, #tpu.memory_space<smem>>
    %c0_i32 = arith.constant 0 : i32
    return %1, %arg0 : i32, i32
  }
  func.func @transform_2(%arg0: i32, %arg1: i32, %arg2: memref<2xi32, #tpu.memory_space<smem>>, %arg3: memref<2xi32, #tpu.memory_space<smem>>) -> (i32, i32) {
    %c0_i32 = arith.constant 0 : i32
    %c0_i32_0 = arith.constant 0 : i32
    return %c0_i32, %arg1 : i32, i32
  }
  func.func @transform_3(%arg0: i32, %arg1: i32, %arg2: memref<2xi32, #tpu.memory_space<smem>>, %arg3: memref<2xi32, #tpu.memory_space<smem>>) -> (i32, i32) {
    %c0_i32 = arith.constant 0 : i32
    return %arg0, %arg1 : i32, i32
  }
}

</mosaic_0001>

<llo_original>
// kernel: tpu_custom_call.1
$region0: #{tpu_custom_call.1}
  #allocation0 [shape = 'u32[]', space=smem, size = 0x4, offset = 0x4, fixed_abs, tag = 'smem constant byte address 0x4 - core index']
  #allocation1 [shape = 'u32[144,128]{1,0:T(1,128)}', space=vmem, size = 0x12000, scoped, tag = 'internal scratch']
  #allocation2 [shape = 's32[1]{0}', space=sflag, size = 0x4, scoped, tag = 'scoped memory for tpu_custom_call.1']
  #allocation3 [shape = 'u8[512]{0}', space=smem, size = 0x200, scoped, tag = 'prefetched SMEM operand 0']
  #allocation4 [shape = 'u8[512]{0}', space=smem, size = 0x200, scoped, tag = 'prefetched SMEM operand 1']
  %s0 = inlined_call_operand.vmem [shape: s32[2], index: 0, kind: input, shape index: {}]
  %s1 = inlined_call_operand.vmem [shape: s32[2], index: 1, kind: input, shape index: {}]
  %s2 = inlined_call_operand.vmem [shape: f32[48,8], index: 2, kind: input, shape index: {}]
  %s3 = inlined_call_operand.vmem [shape: f32[48,8], index: 3, kind: input, shape index: {}]
  %s4 = inlined_call_operand.vmem [shape: s32[1,1024], index: 4, kind: input, shape index: {}]
  %s5 = inlined_call_operand.hbm [shape: f32[8,768], index: 5, kind: output, shape index: {}]
  %s6 = sld [smem:[#allocation0]]
  $region45: #{tpu_custom_call.1} parent=0
    _
  %s8 = ssub.s32 1, %s6
  %s9 = scalar_select 0, %s8, %s6
  %s10 = sshll.u32 %s0, 4
  %s11 = int_to_ptr.vmem [resolvable:$true] %s10
  %13 = dma.vmem_to_smem %s11, 16, [#allocation3], [#allocation2]
  %s14 = sshll.u32 %s1, 4
  %s15 = int_to_ptr.vmem [resolvable:$true] %s14
  %17 = dma.vmem_to_smem %s15, 16, [#allocation4], [#allocation2]
  %18 = dma.done [#allocation2], 32
  %19 = sfence
  $region1: #{tpu_custom_call.1} parent=0
    #allocation5 [shape = 'u8[32768]{0}', space=vmem, size = 0x8000, scoped, tag = 'output window, operand 0']
    #allocation6 [shape = 's32[2]{0}', space=sflag, size = 0x8, scoped, tag = 'scoped memory for tpu_custom_call.1']
    %20 = vsyncpa [#allocation6], 0
    %s21 = scalar_lea.sflag [#allocation6], 1
    %22 = vsyncpa %s21, 0
    loop: start=0, step=1, limit=4
    $region2: #{tpu_custom_call.1} parent=1 // loop_pre_header
      _
    $region3: #{tpu_custom_call.1} parent=1 // loop_header
      %s24 = sphi 0, %s28
      %p25 = scmp.ge.s32.totalorder %s24, 4
      %s31 = sphi 0, %s43
      %s32 = sphi 0, %s39
      %s33 = sphi 0, %s31
      %s34 = sphi 0, %s32
      %s35 = sphi 0, %s33
      %s36 = sphi 0, %s34
      %s50 = sphi 0, %s52
      %s53 = sphi 0, %s50
      %s54 = sphi 0, %s53
      %s70 = sphi 0, %s54
      %s80 = sphi 0, %s82
      %s83 = sphi 0, %s80
      %s84 = sphi 0, %s83
      %s100 = sphi 0, %s84
      %s106 = sphi 0, %s108
      %s109 = sphi 0, %s106
      %s110 = sphi 0, %s109
      %s126 = sphi 0, %s110
      %s134 = sphi 0, %s136
      %s137 = sphi 0, %s134
      %s138 = sphi 0, %s137
      %s154 = sphi 0, %s138
    $region4: #{tpu_custom_call.1} parent=1 // loop_header_branch
      %27 = sbr.rel (%p25) target = $region8
    $region5: #{tpu_custom_call.1} parent=1 // loop_body
      %s29 = ssub.s32 %s24, 1
      %s30 = ssub.s32 %s24, 2
      %s37 = sadd.s32 1, %s32
      %p38 = scmp.ge.s32.totalorder %s37, 2
      %s39 = scalar_select %p38, 0, %s37
      %s40 = sadd.s32 1, %s31
      %s41 = scalar_select %p38, %s40, %s31
      %p42 = scmp.ge.s32.totalorder %s41, 1
      %s43 = scalar_select %p42, 0, %s41
      %s44 = sld [smem:[#allocation3 + %s32]]
      %s45 = sld [smem:[#allocation3 + %s39]]
      %s46 = ssub.s32 %s44, %s45
      %s47 = ssub.s32 %s31, %s43
      %s48 = sor.u32 %s46, %s47
      %p49 = scmp.eq.s32.totalorder %s48, 0
      %s51 = sadd.s32 %s50, 1
      %s52 = scalar_select %p49, %s50, %s51
      %p55 = pneg %p49
      %p56 = scmp.eq.s32.totalorder %s24, 1
      %p57 = por %p55, %p56
      %p58 = scmp.ne.s32.totalorder %s50, %s53
      %p59 = scmp.eq.s32.totalorder %s24, 0
      %p60 = por %p58, %p59
      %p61 = scmp.ne.s32.totalorder %s50, %s53
      %p62 = scmp.eq.s32.totalorder %s29, 1
      %p63 = por %p61, %p62
      %p64 = scmp.ne.s32.totalorder %s53, %s54
      %p65 = scmp.eq.s32.totalorder %s29, 0
      %p66 = por %p64, %p65
      %p67 = scmp.ne.s32.totalorder %s53, %s54
      %p68 = scmp.eq.s32.totalorder %s30, 1
      %p69 = por %p67, %p68
      %p71 = scmp.ne.s32.totalorder %s54, %s70
      %p72 = scmp.eq.s32.totalorder %s30, 0
      %p73 = por %p71, %p72
      %s74 = sld [smem:[#allocation4 + %s32]]
      %s75 = sld [smem:[#allocation4 + %s39]]
      %s76 = ssub.s32 %s74, %s75
      %s77 = ssub.s32 %s31, %s43
      %s78 = sor.u32 %s76, %s77
      %p79 = scmp.eq.s32.totalorder %s78, 0
      %s81 = sadd.s32 %s80, 1
      %s82 = scalar_select %p79, %s80, %s81
      %p85 = pneg %p79
      %p86 = scmp.eq.s32.totalorder %s24, 1
      %p87 = por %p85, %p86
      %p88 = scmp.ne.s32.totalorder %s80, %s83
      %p89 = scmp.eq.s32.totalorder %s24, 0
      %p90 = por %p88, %p89
      %p91 = scmp.ne.s32.totalorder %s80, %s83
      %p92 = scmp.eq.s32.totalorder %s29, 1
      %p93 = por %p91, %p92
      %p94 = scmp.ne.s32.totalorder %s83, %s84
      %p95 = scmp.eq.s32.totalorder %s29, 0
      %p96 = por %p94, %p95
      %p97 = scmp.ne.s32.totalorder %s83, %s84
      %p98 = scmp.eq.s32.totalorder %s30, 1
      %p99 = por %p97, %p98
      %p101 = scmp.ne.s32.totalorder %s84, %s100
      %p102 = scmp.eq.s32.totalorder %s30, 0
      %p103 = por %p101, %p102
      %s104 = ssub.s32 %s32, %s39
      %p105 = scmp.eq.s32.totalorder %s104, 0
      %s107 = sadd.s32 %s106, 1
      %s108 = scalar_select %p105, %s106, %s107
      %p111 = pneg %p105
      %p112 = scmp.eq.s32.totalorder %s24, 1
      %p113 = por %p111, %p112
      %p114 = scmp.ne.s32.totalorder %s106, %s109
      %p115 = scmp.eq.s32.totalorder %s24, 0
      %p116 = por %p114, %p115
      %p117 = scmp.ne.s32.totalorder %s106, %s109
      %p118 = scmp.eq.s32.totalorder %s29, 1
      %p119 = por %p117, %p118
      %p120 = scmp.ne.s32.totalorder %s109, %s110
      %p121 = scmp.eq.s32.totalorder %s29, 0
      %p122 = por %p120, %p121
      %p123 = scmp.ne.s32.totalorder %s109, %s110
      %p124 = scmp.eq.s32.totalorder %s30, 1
      %p125 = por %p123, %p124
      %p127 = scmp.ne.s32.totalorder %s110, %s126
      %p128 = scmp.eq.s32.totalorder %s30, 0
      %p129 = por %p127, %p128
      %s130 = ssub.s32 %s31, %s43
      %s131 = ssub.s32 %s32, %s39
      %s132 = sor.u32 %s130, %s131
      %p133 = scmp.eq.s32.totalorder %s132, 0
      %s135 = sadd.s32 %s134, 1
      %s136 = scalar_select %p133, %s134, %s135
      %p139 = pneg %p133
      %p140 = scmp.eq.s32.totalorder %s24, 1
      %p141 = por %p139, %p140
      %p142 = scmp.ne.s32.totalorder %s134, %s137
      %p143 = scmp.eq.s32.totalorder %s24, 0
      %p144 = por %p142, %p143
      %p145 = scmp.ne.s32.totalorder %s134, %s137
      %p146 = scmp.eq.s32.totalorder %s29, 1
      %p147 = por %p145, %p146
      %p148 = scmp.ne.s32.totalorder %s137, %s138
      %p149 = scmp.eq.s32.totalorder %s29, 0
      %p150 = por %p148, %p149
      %p151 = scmp.ne.s32.totalorder %s137, %s138
      %p152 = scmp.eq.s32.totalorder %s30, 1
      %p153 = por %p151, %p152
      %p155 = scmp.ne.s32.totalorder %s138, %s154
      %p156 = scmp.eq.s32.totalorder %s30, 0
      %p157 = por %p155, %p156
      %p158 = scmp.le.s32.totalorder 1, %s24
      %p159 = scmp.lt.s32.totalorder %s24, 3
      %p160 = pnand %p158, %p159
      %p161 = pneg %p160
      // Predicated region
      $region9: #{tpu_custom_call.1} parent=5 // pred_check
        _
      $region10: #{tpu_custom_call.1} parent=5 // pred_check_branch
        %163 = sbr.rel (%p160) target = $region12
      $region11: #{tpu_custom_call.1} parent=5 // pred_region
        %s164 = ssub.s32 %s24, 1
      $region12: #{tpu_custom_call.1} parent=5 // pred_fallthru
        _
      %p165 = scmp.lt.s32.totalorder %s24, 2
      // Predicated region
      $region13: #{tpu_custom_call.1} parent=5 // pred_check
        %p166 = pneg %p165
      $region14: #{tpu_custom_call.1} parent=5 // pred_check_branch
        %168 = sbr.rel (%p166) target = $region16
      $region15: #{tpu_custom_call.1} parent=5 // pred_region
        // Predicated region
        $region17: #{tpu_custom_call.1} parent=15 // pred_check
          %p169 = pneg %p60
        $region18: #{tpu_custom_call.1} parent=15 // pred_check_branch
          %171 = sbr.rel (%p169) target = $region20
        $region19: #{tpu_custom_call.1} parent=15 // pred_region
          %s172 = sld [smem:[#allocation3 + %s32]]
          %s173 = smul.u32 3, %s172
          %p174 = scmp.lt.s32.totalorder %s173, 5
          %s175 = scalar_select %p174, %s173, 5
          %p176 = scmp.lt.s32.totalorder %s31, 0
          %s177 = scalar_select %p176, %s31, 0
          %s178 = sadd.s32 %s177, %s175
          %s179 = smul.addr %s178, 8
          %s180 = scalar_lea.vmem %s2, %s179
          %s181 = sld [smem:[#allocation3 + %s32]]
          %s182 = smul.u32 3, %s181
        $region20: #{tpu_custom_call.1} parent=15 // pred_fallthru
          _
        // Predicated region
        $region21: #{tpu_custom_call.1} parent=15 // pred_check
          %p183 = pneg %p90
        $region22: #{tpu_custom_call.1} parent=15 // pred_check_branch
          %185 = sbr.rel (%p183) target = $region24
        $region23: #{tpu_custom_call.1} parent=15 // pred_region
          %s186 = sld [smem:[#allocation4 + %s32]]
          %s187 = smul.u32 3, %s186
          %p188 = scmp.lt.s32.totalorder %s187, 5
          %s189 = scalar_select %p188, %s187, 5
          %p190 = scmp.lt.s32.totalorder %s31, 0
          %s191 = scalar_select %p190, %s31, 0
          %s192 = sadd.s32 %s191, %s189
          %s193 = smul.addr %s192, 8
          %s194 = scalar_lea.vmem %s3, %s193
          %s195 = sld [smem:[#allocation4 + %s32]]
          %s196 = smul.u32 3, %s195
        $region24: #{tpu_custom_call.1} parent=15 // pred_fallthru
          _
        // Predicated region
        $region25: #{tpu_custom_call.1} parent=15 // pred_check
          %p197 = pneg %p116
        $region26: #{tpu_custom_call.1} parent=15 // pred_check_branch
          %199 = sbr.rel (%p197) target = $region28
        $region27: #{tpu_custom_call.1} parent=15 // pred_region
          %s200 = smul.u32 4, %s32
          %p201 = scmp.lt.s32.totalorder %s200, 7
          %s202 = scalar_select %p201, %s200, 7
          %s203 = scalar_lea.vmem %s4, %s202
          %s204 = smul.u32 4, %s32
        $region28: #{tpu_custom_call.1} parent=15 // pred_fallthru
          _
      $region16: #{tpu_custom_call.1} parent=5 // pred_fallthru
        _
      %p205 = scmp.le.s32.totalorder 1, %s24
      %p206 = scmp.lt.s32.totalorder %s24, 3
      %p207 = pnand %p205, %p206
      %p208 = pneg %p207
      // Predicated region
      $region29: #{tpu_custom_call.1} parent=5 // pred_check
        _
      $region30: #{tpu_custom_call.1} parent=5 // pred_check_branch
        %210 = sbr.rel (%p207) target = $region32
      $region31: #{tpu_custom_call.1} parent=5 // pred_region
        %s211 = ssub.s32 %s24, 1
        %s212 = sld [smem:[#allocation3 + %s34]]
        %s213 = smul.u32 3, %s212
        %p214 = scmp.lt.s32.totalorder %s213, 5
        %s215 = scalar_select %p214, %s213, 5
        %p216 = scmp.lt.s32.totalorder %s33, 0
        %s217 = scalar_select %p216, %s33, 0
        %s218 = sadd.s32 %s217, %s215
        %s219 = smul.addr %s218, 8
        %s220 = scalar_lea.vmem %s2, %s219
        %p221 = pneg %p66
        %p222 = pneg %p63
        %s223 = sld [smem:[#allocation4 + %s34]]
        %s224 = smul.u32 3, %s223
        %p225 = scmp.lt.s32.totalorder %s224, 5
        %s226 = scalar_select %p225, %s224, 5
        %p227 = scmp.lt.s32.totalorder %s33, 0
        %s228 = scalar_select %p227, %s33, 0
        %s229 = sadd.s32 %s228, %s226
        %s230 = smul.addr %s229, 8
        %s231 = scalar_lea.vmem %s3, %s230
        %p232 = pneg %p96
        %p233 = pneg %p93
        %s234 = smul.u32 4, %s34
        %p235 = scmp.lt.s32.totalorder %s234, 7
        %s236 = scalar_select %p235, %s234, 7
        %s237 = scalar_lea.vmem %s4, %s236
        %p238 = pneg %p122
        %p239 = pneg %p119
        %p240 = pneg %p150
        %p241 = pneg %p147
        %s242 = sand.u32 %s137, 1
        %s243 = scalar_lea.sflag [#allocation6], %s242
        %s244 = sand.u32 %s137, 1
        %s245 = smul.addr %s244, 32
        %s246 = scalar_lea.vmem [#allocation5], %s245
        %s247 = sld [smem:[#allocation3 + %s34]]
        %s248 = smul.u32 3, %s247
        %p249 = scmp.lt.s32.totalorder %s248, 5
        %s250 = scalar_select %p249, %s248, 5
        %p251 = scmp.lt.s32.totalorder %s33, 0
        %s252 = scalar_select %p251, %s33, 0
        %s253 = sadd.s32 %s252, %s250
        %s254 = smul.addr %s253, 8
        %s255 = scalar_lea.vmem %s2, %s254
        %s256 = sld [smem:[#allocation3 + %s34]]
        %s257 = smul.u32 3, %s256
        %s258 = sld [smem:[#allocation4 + %s34]]
        %s259 = smul.u32 3, %s258
        %p260 = scmp.lt.s32.totalorder %s259, 5
        %s261 = scalar_select %p260, %s259, 5
        %p262 = scmp.lt.s32.totalorder %s33, 0
        %s263 = scalar_select %p262, %s33, 0
        %s264 = sadd.s32 %s263, %s261
        %s265 = smul.addr %s264, 8
        %s266 = scalar_lea.vmem %s3, %s265
        %s267 = sld [smem:[#allocation4 + %s34]]
        %s268 = smul.u32 3, %s267
        %s269 = smul.u32 4, %s34
        %p270 = scmp.lt.s32.totalorder %s269, 7
        %s271 = scalar_select %p270, %s269, 7
        %s272 = scalar_lea.vmem %s4, %s271
        %s273 = smul.u32 4, %s34
        %s274 = smul.u32 4, %s34
        %s275 = ssub.s32 6, %s274
        %p276 = scmp.lt.s32.totalorder %s275, 4
        %s277 = scalar_select %p276, %s275, 4
        %s278 = smul.u32 128, %s277
        %v279 = vld [vmem:[%s272] sm:$0xf]
        %v280 = vlaneseq
        %v281 = vshrl.u32 %v280, 7
        %v282 = vadd.s32 %v281, 8
        %v283 = vadd.s32 %v281, 16
        %v284 = vlaneseq
        %v285 = vshrl.u32 %v284, 7
        %v286 = vsub.s32 0, %v285
        %v287 = vrot.slane %v279, %v286
        %v288 = vlaneseq
        %v289 = vshrl.u32 %v288, 7
        %v290 = vsub.s32 1, %v289
        %v291 = vrot.slane %v279, %v290
        %v292 = vlaneseq
        %v293 = vshrl.u32 %v292, 7
        %v294 = vsub.s32 2, %v293
        %v295 = vrot.slane %v279, %v294
        %v296 = vlaneseq
        %v297 = vshrl.u32 %v296, 7
        %v298 = vsub.s32 3, %v297
        %v299 = vrot.slane %v279, %v298
        %vm300 = vcmp.eq.s32.totalorder %v281, %v287
        %vm301 = vcmp.eq.s32.totalorder %v281, %v291
        %vm302 = vcmp.eq.s32.totalorder %v281, %v295
        %vm303 = vcmp.eq.s32.totalorder %v281, %v299
        %vm304 = vcmp.eq.s32.totalorder %v282, %v287
        %vm305 = vcmp.eq.s32.totalorder %v282, %v291
        %vm306 = vcmp.eq.s32.totalorder %v282, %v295
        %vm307 = vcmp.eq.s32.totalorder %v282, %v299
        %vm308 = vcmp.eq.s32.totalorder %v283, %v287
        %vm309 = vcmp.eq.s32.totalorder %v283, %v291
        %vm310 = vcmp.eq.s32.totalorder %v283, %v295
        %vm311 = vcmp.eq.s32.totalorder %v283, %v299
        %v312 = vsel %vm300, 1, 0
        %v313 = vsel %vm301, 1, 0
        %v314 = vsel %vm302, 1, 0
        %v315 = vsel %vm303, 1, 0
        %v316 = vsel %vm304, 1, 0
        %v317 = vsel %vm305, 1, 0
        %v318 = vsel %vm306, 1, 0
        %v319 = vsel %vm307, 1, 0
        %v320 = vsel %vm308, 1, 0
        %v321 = vsel %vm309, 1, 0
        %v322 = vsel %vm310, 1, 0
        %v323 = vsel %vm311, 1, 0
        %v324 = vcvt.s32.f32 %v312
        %v325 = vcvt.s32.f32 %v313
        %v326 = vcvt.s32.f32 %v314
        %v327 = vcvt.s32.f32 %v315
        %v328 = vcvt.s32.f32 %v316
        %v329 = vcvt.s32.f32 %v317
        %v330 = vcvt.s32.f32 %v318
        %v331 = vcvt.s32.f32 %v319
        %v332 = vcvt.s32.f32 %v320
        %v333 = vcvt.s32.f32 %v321
        %v334 = vcvt.s32.f32 %v322
        %v335 = vcvt.s32.f32 %v323
        %v336 = vadd.s32 %v281, 24
        %v337 = vadd.s32 %v282, 24
        %v338 = vadd.s32 %v283, 24
        %vm339 = vcmp.eq.s32.totalorder %v336, %v287
        %vm340 = vcmp.eq.s32.totalorder %v336, %v291
        %vm341 = vcmp.eq.s32.totalorder %v336, %v295
        %vm342 = vcmp.eq.s32.totalorder %v336, %v299
        %vm343 = vcmp.eq.s32.totalorder %v337, %v287
        %vm344 = vcmp.eq.s32.totalorder %v337, %v291
        %vm345 = vcmp.eq.s32.totalorder %v337, %v295
        %vm346 = vcmp.eq.s32.totalorder %v337, %v299
        %vm347 = vcmp.eq.s32.totalorder %v338, %v287
        %vm348 = vcmp.eq.s32.totalorder %v338, %v291
        %vm349 = vcmp.eq.s32.totalorder %v338, %v295
        %vm350 = vcmp.eq.s32.totalorder %v338, %v299
        %v351 = vsel %vm339, 1, 0
        %v352 = vsel %vm340, 1, 0
        %v353 = vsel %vm341, 1, 0
        %v354 = vsel %vm342, 1, 0
        %v355 = vsel %vm343, 1, 0
        %v356 = vsel %vm344, 1, 0
        %v357 = vsel %vm345, 1, 0
        %v358 = vsel %vm346, 1, 0
        %v359 = vsel %vm347, 1, 0
        %v360 = vsel %vm348, 1, 0
        %v361 = vsel %vm349, 1, 0
        %v362 = vsel %vm350, 1, 0
        %v363 = vcvt.s32.f32 %v351
        %v364 = vcvt.s32.f32 %v352
        %v365 = vcvt.s32.f32 %v353
        %v366 = vcvt.s32.f32 %v354
        %v367 = vcvt.s32.f32 %v355
        %v368 = vcvt.s32.f32 %v356
        %v369 = vcvt.s32.f32 %v357
        %v370 = vcvt.s32.f32 %v358
        %v371 = vcvt.s32.f32 %v359
        %v372 = vcvt.s32.f32 %v360
        %v373 = vcvt.s32.f32 %v361
        %v374 = vcvt.s32.f32 %v362
        %v375 = vld [vmem:[%s255] sm:$0xff]
        %v376 = vld [vmem:[%s255 + $0x8] sm:$0xff]
        %v377 = vld [vmem:[%s255 + $0x10] sm:$0xff]
        %v378 = vld [vmem:[%s266] sm:$0xff]
        %v379 = vld [vmem:[%s266 + $0x8] sm:$0xff]
        %v380 = vld [vmem:[%s266 + $0x10] sm:$0xff]
        %381 = vxpose.xlu0.b32.start [1/16] %v378, 128
        %382 = vxpose.xlu0.b32.cont [2/16] %v379, 128
        %383 = vxpose.xlu0.b32.cont [3/16] %v380, 128
        %384 = vxpose.xlu0.b32.cont [4/16] 0.0, 128
        %385 = vxpose.xlu0.b32.cont [5/16] 0.0, 128
        %386 = vxpose.xlu0.b32.cont [6/16] 0.0, 128
        %387 = vxpose.xlu0.b32.cont [7/16] 0.0, 128
        %388 = vxpose.xlu0.b32.cont [8/16] 0.0, 128
        %389 = vxpose.xlu0.b32.cont [9/16] 0.0, 128
        %390 = vxpose.xlu0.b32.cont [10/16] 0.0, 128
        %391 = vxpose.xlu0.b32.cont [11/16] 0.0, 128
        %392 = vxpose.xlu0.b32.cont [12/16] 0.0, 128
        %393 = vxpose.xlu0.b32.cont [13/16] 0.0, 128
        %394 = vxpose.xlu0.b32.cont [14/16] 0.0, 128
        %395 = vxpose.xlu0.b32.cont [15/16] 0.0, 128
        %396 = vxpose.xlu0.b32.end [16/16] 0.0, 128
        %v397 = vpop.trf.xlu0
        %v398 = vpop.trf.xlu0
        %v399 = vpop.trf.xlu0
        %v400 = vpop.trf.xlu0
        %v401 = vpop.trf.xlu0
        %v402 = vpop.trf.xlu0
        %v403 = vpop.trf.xlu0
        %v404 = vpop.trf.xlu0
        %v405 = vpop.trf.xlu0
        %v406 = vpop.trf.xlu0
        %v407 = vpop.trf.xlu0
        %v408 = vpop.trf.xlu0
        %v409 = vpop.trf.xlu0
        %v410 = vpop.trf.xlu0
        %v411 = vpop.trf.xlu0
        %v412 = vpop.trf.xlu0
        %vm413 = vcmask 195584
        %v415 = vsel %vm413, %v397, 0
        %v417 = vand.u32 %v364, 4294901760
        %418 = vmatprep.subr.mxu0 %v417
        %v419 = vand.u32 %v363, 4294901760
        %420 = vmatpush1.msra.mxu0 %v419
        %v421 = vand.u32 %v368, 4294901760
        %422 = vmatprep.subr.mxu0 %v421
        %v423 = vand.u32 %v367, 4294901760
        %424 = vmatpush1.msra.mxu0 %v423
        %v425 = vand.u32 %v372, 4294901760
        %426 = vmatprep.subr.mxu0 %v425
        %v427 = vand.u32 %v371, 4294901760
        %428 = vmatpush1.msra.mxu0 %v427
        %429 = vmatprep.subr.mxu0 0.0
        %430 = vmatpush1.msra.mxu0 0.0
        %431 = vmatprep.subr.mxu0 0.0
        %432 = vmatpush1.msra.mxu0 0.0
        %433 = vmatprep.subr.mxu0 0.0
        %434 = vmatpush1.msra.mxu0 0.0
        %435 = vmatprep.subr.mxu0 0.0
        %436 = vmatpush1.msra.mxu0 0.0
        %437 = vmatprep.subr.mxu0 0.0
        %438 = vmatpush1.msra.mxu0 0.0
        %439 = vmatprep.subr.mxu0 0.0
        %440 = vmatpush1.msra.mxu0 0.0
        %441 = vmatprep.subr.mxu0 0.0
        %442 = vmatpush1.msra.mxu0 0.0
        %443 = vmatprep.subr.mxu0 0.0
        %444 = vmatpush1.msra.mxu0 0.0
        %445 = vmatprep.subr.mxu0 0.0
        %446 = vmatpush1.msra.mxu0 0.0
        %447 = vmatprep.subr.mxu0 0.0
        %448 = vmatpush1.msra.mxu0 0.0
        %449 = vmatprep.subr.mxu0 0.0
        %450 = vmatpush1.msra.mxu0 0.0
        %451 = vmatprep.subr.mxu0 0.0
        %452 = vmatpush1.msra.mxu0 0.0
        %453 = vmatprep.subr.mxu0 0.0
        %454 = vmatpush1.msra.mxu0 0.0
        %455 = vmatprep.subr.mxu0 0.0
        %456 = vmatpush1.msra.mxu0 0.0
        %457 = vmatprep.subr.mxu0 0.0
        %458 = vmatpush1.msra.mxu0 0.0
        %459 = vmatprep.subr.mxu0 0.0
        %460 = vmatpush1.msra.mxu0 0.0
        %461 = vmatprep.subr.mxu0 0.0
        %462 = vmatpush1.msra.mxu0 0.0
        %463 = vmatprep.subr.mxu0 0.0
        %464 = vmatpush1.msra.mxu0 0.0
        %465 = vmatprep.subr.mxu0 0.0
        %466 = vmatpush1.msra.mxu0 0.0
        %467 = vmatprep.subr.mxu0 0.0
        %468 = vmatpush1.msra.mxu0 0.0
        %469 = vmatprep.subr.mxu0 0.0
        %470 = vmatpush1.msra.mxu0 0.0
        %471 = vmatprep.subr.mxu0 0.0
        %472 = vmatpush1.msra.mxu0 0.0
        %473 = vmatprep.subr.mxu0 0.0
        %474 = vmatpush1.msra.mxu0 0.0
        %475 = vmatprep.subr.mxu0 0.0
        %476 = vmatpush1.msra.mxu0 0.0
        %477 = vmatprep.subr.mxu0 0.0
        %478 = vmatpush1.msra.mxu0 0.0
        %479 = vmatprep.subr.mxu0 0.0
        %480 = vmatpush1.msra.mxu0 0.0
        %481 = vmatprep.subr.mxu0 0.0
        %482 = vmatpush1.msra.mxu0 0.0
        %483 = vmatprep.subr.mxu0 0.0
        %484 = vmatpush1.msra.mxu0 0.0
        %485 = vmatprep.subr.mxu0 0.0
        %486 = vmatpush1.msra.mxu0 0.0
        %487 = vmatprep.mubr.f32.mxu0 0.0
        %v488 = vand.u32 %v415, 4294901760
        %v489 = vsub.f32 %v415, %v488
        %v490 = vand.u32 %v489, 4294901760
        %v491 = vsub.f32 %v489, %v490
        %v492 = vand.u32 %v491, 4294901760
        %493 = vmatmul.mubr.f32.gmra.mrb[0].mxu0 %v492
        %v494 = vpop.f32.mrb[0].mxu0
        %v495 = vadd.f32 0.0, %v494
        %v496 = vpop.f32.mrb[0].mxu0
        %v497 = vadd.f32 0.0, %v496
        %498 = vdwg.mxu0
        %v499 = vand.u32 %v364, 4294901760
        %v500 = vsub.f32 %v364, %v499
        %v501 = vand.u32 %v500, 4294901760
        %v502 = vsub.f32 %v500, %v501
        %v503 = vand.u32 %v502, 4294901760
        %504 = vmatprep.subr.mxu0 %v503
        %v505 = vand.u32 %v363, 4294901760
        %v506 = vsub.f32 %v363, %v505
        %v507 = vand.u32 %v506, 4294901760
        %v508 = vsub.f32 %v506, %v507
        %v509 = vand.u32 %v508, 4294901760
        %510 = vmatpush1.msra.mxu0 %v509
        %v511 = vand.u32 %v368, 4294901760
        %v512 = vsub.f32 %v368, %v511
        %v513 = vand.u32 %v512, 4294901760
        %v514 = vsub.f32 %v512, %v513
        %v515 = vand.u32 %v514, 4294901760
        %516 = vmatprep.subr.mxu0 %v515
        %v517 = vand.u32 %v367, 4294901760
        %v518 = vsub.f32 %v367, %v517
        %v519 = vand.u32 %v518, 4294901760
        %v520 = vsub.f32 %v518, %v519
        %v521 = vand.u32 %v520, 4294901760
        %522 = vmatpush1.msra.mxu0 %v521
        %v523 = vand.u32 %v372, 4294901760
        %v524 = vsub.f32 %v372, %v523
        %v525 = vand.u32 %v524, 4294901760
        %v526 = vsub.f32 %v524, %v525
        %v527 = vand.u32 %v526, 4294901760
        %528 = vmatprep.subr.mxu0 %v527
        %v529 = vand.u32 %v371, 4294901760
        %v530 = vsub.f32 %v371, %v529
        %v531 = vand.u32 %v530, 4294901760
        %v532 = vsub.f32 %v530, %v531
        %v533 = vand.u32 %v532, 4294901760
        %534 = vmatpush1.msra.mxu0 %v533
        %535 = vmatprep.subr.mxu0 0.0
        %536 = vmatpush1.msra.mxu0 0.0
        %537 = vmatprep.subr.mxu0 0.0
        %538 = vmatpush1.msra.mxu0 0.0
        %539 = vmatprep.subr.mxu0 0.0
        %540 = vmatpush1.msra.mxu0 0.0
        %541 = vmatprep.subr.mxu0 0.0
        %542 = vmatpush1.msra.mxu0 0.0
        %543 = vmatprep.subr.mxu0 0.0
        %544 = vmatpush1.msra.mxu0 0.0
        %545 = vmatprep.subr.mxu0 0.0
        %546 = vmatpush1.msra.mxu0 0.0
        %547 = vmatprep.subr.mxu0 0.0
        %548 = vmatpush1.msra.mxu0 0.0
        %549 = vmatprep.subr.mxu0 0.0
        %550 = vmatpush1.msra.mxu0 0.0
        %551 = vmatprep.subr.mxu0 0.0
        %552 = vmatpush1.msra.mxu0 0.0
        %553 = vmatprep.subr.mxu0 0.0
        %554 = vmatpush1.msra.mxu0 0.0
        %555 = vmatprep.subr.mxu0 0.0
        %556 = vmatpush1.msra.mxu0 0.0
        %557 = vmatprep.subr.mxu0 0.0
        %558 = vmatpush1.msra.mxu0 0.0
        %559 = vmatprep.subr.mxu0 0.0
        %560 = vmatpush1.msra.mxu0 0.0
        %561 = vmatprep.subr.mxu0 0.0
        %562 = vmatpush1.msra.mxu0 0.0
        %563 = vmatprep.subr.mxu0 0.0
        %564 = vmatpush1.msra.mxu0 0.0
        %565 = vmatprep.subr.mxu0 0.0
        %566 = vmatpush1.msra.mxu0 0.0
        %567 = vmatprep.subr.mxu0 0.0
        %568 = vmatpush1.msra.mxu0 0.0
        %569 = vmatprep.subr.mxu0 0.0
        %570 = vmatpush1.msra.mxu0 0.0
        %571 = vmatprep.subr.mxu0 0.0
        %572 = vmatpush1.msra.mxu0 0.0
        %573 = vmatprep.subr.mxu0 0.0
        %574 = vmatpush1.msra.mxu0 0.0
        %575 = vmatprep.subr.mxu0 0.0
        %576 = vmatpush1.msra.mxu0 0.0
        %577 = vmatprep.subr.mxu0 0.0
        %578 = vmatpush1.msra.mxu0 0.0
        %579 = vmatprep.subr.mxu0 0.0
        %580 = vmatpush1.msra.mxu0 0.0
        %581 = vmatprep.subr.mxu0 0.0
        %582 = vmatpush1.msra.mxu0 0.0
        %583 = vmatprep.subr.mxu0 0.0
        %584 = vmatpush1.msra.mxu0 0.0
        %585 = vmatprep.subr.mxu0 0.0
        %586 = vmatpush1.msra.mxu0 0.0
        %587 = vmatprep.subr.mxu0 0.0
        %588 = vmatpush1.msra.mxu0 0.0
        %589 = vmatprep.subr.mxu0 0.0
        %590 = vmatpush1.msra.mxu0 0.0
        %591 = vmatprep.subr.mxu0 0.0
        %592 = vmatpush1.msra.mxu0 0.0
        %593 = vmatprep.mubr.f32.mxu0 0.0
        %v594 = vand.u32 %v415, 4294901760
        %595 = vmatmul.mubr.f32.gmra.mrb[0].mxu0 %v594
        %v596 = vpop.f32.mrb[0].mxu0
        %v597 = vadd.f32 %v495, %v596
        %v598 = vpop.f32.mrb[0].mxu0
        %v599 = vadd.f32 %v497, %v598
        %600 = vdwg.mxu0
        %v601 = vand.u32 %v364, 4294901760
        %v602 = vsub.f32 %v364, %v601
        %603 = vmatprep.subr.mxu0 %v602
        %v604 = vand.u32 %v363, 4294901760
        %v605 = vsub.f32 %v363, %v604
        %606 = vmatpush1.msra.mxu0 %v605
        %v607 = vand.u32 %v368, 4294901760
        %v608 = vsub.f32 %v368, %v607
        %609 = vmatprep.subr.mxu0 %v608
        %v610 = vand.u32 %v367, 4294901760
        %v611 = vsub.f32 %v367, %v610
        %612 = vmatpush1.msra.mxu0 %v611
        %v613 = vand.u32 %v372, 4294901760
        %v614 = vsub.f32 %v372, %v613
        %615 = vmatprep.subr.mxu0 %v614
        %v616 = vand.u32 %v371, 4294901760
        %v617 = vsub.f32 %v371, %v616
        %618 = vmatpush1.msra.mxu0 %v617
        %619 = vmatprep.subr.mxu0 0.0
        %620 = vmatpush1.msra.mxu0 0.0
        %621 = vmatprep.subr.mxu0 0.0
        %622 = vmatpush1.msra.mxu0 0.0
        %623 = vmatprep.subr.mxu0 0.0
        %624 = vmatpush1.msra.mxu0 0.0
        %625 = vmatprep.subr.mxu0 0.0
        %626 = vmatpush1.msra.mxu0 0.0
        %627 = vmatprep.subr.mxu0 0.0
        %628 = vmatpush1.msra.mxu0 0.0
        %629 = vmatprep.subr.mxu0 0.0
        %630 = vmatpush1.msra.mxu0 0.0
        %631 = vmatprep.subr.mxu0 0.0
        %632 = vmatpush1.msra.mxu0 0.0
        %633 = vmatprep.subr.mxu0 0.0
        %634 = vmatpush1.msra.mxu0 0.0
        %635 = vmatprep.subr.mxu0 0.0
        %636 = vmatpush1.msra.mxu0 0.0
        %637 = vmatprep.subr.mxu0 0.0
        %638 = vmatpush1.msra.mxu0 0.0
        %639 = vmatprep.subr.mxu0 0.0
        %640 = vmatpush1.msra.mxu0 0.0
        %641 = vmatprep.subr.mxu0 0.0
        %642 = vmatpush1.msra.mxu0 0.0
        %643 = vmatprep.subr.mxu0 0.0
        %644 = vmatpush1.msra.mxu0 0.0
        %645 = vmatprep.subr.mxu0 0.0
        %646 = vmatpush1.msra.mxu0 0.0
        %647 = vmatprep.subr.mxu0 0.0
        %648 = vmatpush1.msra.mxu0 0.0
        %649 = vmatprep.subr.mxu0 0.0
        %650 = vmatpush1.msra.mxu0 0.0
        %651 = vmatprep.subr.mxu0 0.0
        %652 = vmatpush1.msra.mxu0 0.0
        %653 = vmatprep.subr.mxu0 0.0
        %654 = vmatpush1.msra.mxu0 0.0
        %655 = vmatprep.subr.mxu0 0.0
        %656 = vmatpush1.msra.mxu0 0.0
        %657 = vmatprep.subr.mxu0 0.0
        %658 = vmatpush1.msra.mxu0 0.0
        %659 = vmatprep.subr.mxu0 0.0
        %660 = vmatpush1.msra.mxu0 0.0
        %661 = vmatprep.subr.mxu0 0.0
        %662 = vmatpush1.msra.mxu0 0.0
        %663 = vmatprep.subr.mxu0 0.0
        %664 = vmatpush1.msra.mxu0 0.0
        %665 = vmatprep.subr.mxu0 0.0
        %666 = vmatpush1.msra.mxu0 0.0
        %667 = vmatprep.subr.mxu0 0.0
        %668 = vmatpush1.msra.mxu0 0.0
        %669 = vmatprep.subr.mxu0 0.0
        %670 = vmatpush1.msra.mxu0 0.0
        %671 = vmatprep.subr.mxu0 0.0
        %672 = vmatpush1.msra.mxu0 0.0
        %673 = vmatprep.subr.mxu0 0.0
        %674 = vmatpush1.msra.mxu0 0.0
        %675 = vmatprep.subr.mxu0 0.0
        %676 = vmatpush1.msra.mxu0 0.0
        %677 = vmatprep.mubr.f32.mxu0 0.0
        %v678 = vand.u32 %v415, 4294901760
        %v679 = vsub.f32 %v415, %v678
        %680 = vmatmul.mubr.f32.gmra.mrb[0].mxu0 %v679
        %v681 = vpop.f32.mrb[0].mxu0
        %v682 = vadd.f32 %v597, %v681
        %v683 = vpop.f32.mrb[0].mxu0
        %v684 = vadd.f32 %v599, %v683
        %685 = vdwg.mxu0
        %v686 = vand.u32 %v364, 4294901760
        %687 = vmatprep.subr.mxu0 %v686
        %v688 = vand.u32 %v363, 4294901760
        %689 = vmatpush1.msra.mxu0 %v688
        %v690 = vand.u32 %v368, 4294901760
        %691 = vmatprep.subr.mxu0 %v690
        %v692 = vand.u32 %v367, 4294901760
        %693 = vmatpush1.msra.mxu0 %v692
        %v694 = vand.u32 %v372, 4294901760
        %695 = vmatprep.subr.mxu0 %v694
        %v696 = vand.u32 %v371, 4294901760
        %697 = vmatpush1.msra.mxu0 %v696
        %698 = vmatprep.subr.mxu0 0.0
        %699 = vmatpush1.msra.mxu0 0.0
        %700 = vmatprep.subr.mxu0 0.0
        %701 = vmatpush1.msra.mxu0 0.0
        %702 = vmatprep.subr.mxu0 0.0
        %703 = vmatpush1.msra.mxu0 0.0
        %704 = vmatprep.subr.mxu0 0.0
        %705 = vmatpush1.msra.mxu0 0.0
        %706 = vmatprep.subr.mxu0 0.0
        %707 = vmatpush1.msra.mxu0 0.0
        %708 = vmatprep.subr.mxu0 0.0
        %709 = vmatpush1.msra.mxu0 0.0
        %710 = vmatprep.subr.mxu0 0.0
        %711 = vmatpush1.msra.mxu0 0.0
        %712 = vmatprep.subr.mxu0 0.0
        %713 = vmatpush1.msra.mxu0 0.0
        %714 = vmatprep.subr.mxu0 0.0
        %715 = vmatpush1.msra.mxu0 0.0
        %716 = vmatprep.subr.mxu0 0.0
        %717 = vmatpush1.msra.mxu0 0.0
        %718 = vmatprep.subr.mxu0 0.0
        %719 = vmatpush1.msra.mxu0 0.0
        %720 = vmatprep.subr.mxu0 0.0
        %721 = vmatpush1.msra.mxu0 0.0
        %722 = vmatprep.subr.mxu0 0.0
        %723 = vmatpush1.msra.mxu0 0.0
        %724 = vmatprep.subr.mxu0 0.0
        %725 = vmatpush1.msra.mxu0 0.0
        %726 = vmatprep.subr.mxu0 0.0
        %727 = vmatpush1.msra.mxu0 0.0
        %728 = vmatprep.subr.mxu0 0.0
        %729 = vmatpush1.msra.mxu0 0.0
        %730 = vmatprep.subr.mxu0 0.0
        %731 = vmatpush1.msra.mxu0 0.0
        %732 = vmatprep.subr.mxu0 0.0
        %733 = vmatpush1.msra.mxu0 0.0
        %734 = vmatprep.subr.mxu0 0.0
        %735 = vmatpush1.msra.mxu0 0.0
        %736 = vmatprep.subr.mxu0 0.0
        %737 = vmatpush1.msra.mxu0 0.0
        %738 = vmatprep.subr.mxu0 0.0
        %739 = vmatpush1.msra.mxu0 0.0
        %740 = vmatprep.subr.mxu0 0.0
        %741 = vmatpush1.msra.mxu0 0.0
        %742 = vmatprep.subr.mxu0 0.0
        %743 = vmatpush1.msra.mxu0 0.0
        %744 = vmatprep.subr.mxu0 0.0
        %745 = vmatpush1.msra.mxu0 0.0
        %746 = vmatprep.subr.mxu0 0.0
        %747 = vmatpush1.msra.mxu0 0.0
        %748 = vmatprep.subr.mxu0 0.0
        %749 = vmatpush1.msra.mxu0 0.0
        %750 = vmatprep.subr.mxu0 0.0
        %751 = vmatpush1.msra.mxu0 0.0
        %752 = vmatprep.subr.mxu0 0.0
        %753 = vmatpush1.msra.mxu0 0.0
        %754 = vmatprep.subr.mxu0 0.0
        %755 = vmatpush1.msra.mxu0 0.0
        %756 = vmatprep.mubr.f32.mxu0 0.0
        %v757 = vand.u32 %v415, 4294901760
        %v758 = vsub.f32 %v415, %v757
        %v759 = vand.u32 %v758, 4294901760
        %760 = vmatmul.mubr.f32.gmra.mrb[0].mxu0 %v759
        %v761 = vpop.f32.mrb[0].mxu0
        %v762 = vadd.f32 %v682, %v761
        %v763 = vpop.f32.mrb[0].mxu0
        %v764 = vadd.f32 %v684, %v763
        %765 = vdwg.mxu0
        %v766 = vand.u32 %v364, 4294901760
        %v767 = vsub.f32 %v364, %v766
        %v768 = vand.u32 %v767, 4294901760
        %769 = vmatprep.subr.mxu0 %v768
        %v770 = vand.u32 %v363, 4294901760
        %v771 = vsub.f32 %v363, %v770
        %v772 = vand.u32 %v771, 4294901760
        %773 = vmatpush1.msra.mxu0 %v772
        %v774 = vand.u32 %v368, 4294901760
        %v775 = vsub.f32 %v368, %v774
        %v776 = vand.u32 %v775, 4294901760
        %777 = vmatprep.subr.mxu0 %v776
        %v778 = vand.u32 %v367, 4294901760
        %v779 = vsub.f32 %v367, %v778
        %v780 = vand.u32 %v779, 4294901760
        %781 = vmatpush1.msra.mxu0 %v780
        %v782 = vand.u32 %v372, 4294901760
        %v783 = vsub.f32 %v372, %v782
        %v784 = vand.u32 %v783, 4294901760
        %785 = vmatprep.subr.mxu0 %v784
        %v786 = vand.u32 %v371, 4294901760
        %v787 = vsub.f32 %v371, %v786
        %v788 = vand.u32 %v787, 4294901760
        %789 = vmatpush1.msra.mxu0 %v788
        %790 = vmatprep.subr.mxu0 0.0
        %791 = vmatpush1.msra.mxu0 0.0
        %792 = vmatprep.subr.mxu0 0.0
        %793 = vmatpush1.msra.mxu0 0.0
        %794 = vmatprep.subr.mxu0 0.0
        %795 = vmatpush1.msra.mxu0 0.0
        %796 = vmatprep.subr.mxu0 0.0
        %797 = vmatpush1.msra.mxu0 0.0
        %798 = vmatprep.subr.mxu0 0.0
        %799 = vmatpush1.msra.mxu0 0.0
        %800 = vmatprep.subr.mxu0 0.0
        %801 = vmatpush1.msra.mxu0 0.0
        %802 = vmatprep.subr.mxu0 0.0
        %803 = vmatpush1.msra.mxu0 0.0
        %804 = vmatprep.subr.mxu0 0.0
        %805 = vmatpush1.msra.mxu0 0.0
        %806 = vmatprep.subr.mxu0 0.0
        %807 = vmatpush1.msra.mxu0 0.0
        %808 = vmatprep.subr.mxu0 0.0
        %809 = vmatpush1.msra.mxu0 0.0
        %810 = vmatprep.subr.mxu0 0.0
        %811 = vmatpush1.msra.mxu0 0.0
        %812 = vmatprep.subr.mxu0 0.0
        %813 = vmatpush1.msra.mxu0 0.0
        %814 = vmatprep.subr.mxu0 0.0
        %815 = vmatpush1.msra.mxu0 0.0
        %816 = vmatprep.subr.mxu0 0.0
        %817 = vmatpush1.msra.mxu0 0.0
        %818 = vmatprep.subr.mxu0 0.0
        %819 = vmatpush1.msra.mxu0 0.0
        %820 = vmatprep.subr.mxu0 0.0
        %821 = vmatpush1.msra.mxu0 0.0
        %822 = vmatprep.subr.mxu0 0.0
        %823 = vmatpush1.msra.mxu0 0.0
        %824 = vmatprep.subr.mxu0 0.0
        %825 = vmatpush1.msra.mxu0 0.0
        %826 = vmatprep.subr.mxu0 0.0
        %827 = vmatpush1.msra.mxu0 0.0
        %828 = vmatprep.subr.mxu0 0.0
        %829 = vmatpush1.msra.mxu0 0.0
        %830 = vmatprep.subr.mxu0 0.0
        %831 = vmatpush1.msra.mxu0 0.0
        %832 = vmatprep.subr.mxu0 0.0
        %833 = vmatpush1.msra.mxu0 0.0
        %834 = vmatprep.subr.mxu0 0.0
        %835 = vmatpush1.msra.mxu0 0.0
        %836 = vmatprep.subr.mxu0 0.0
        %837 = vmatpush1.msra.mxu0 0.0
        %838 = vmatprep.subr.mxu0 0.0
        %839 = vmatpush1.msra.mxu0 0.0
        %840 = vmatprep.subr.mxu0 0.0
        %841 = vmatpush1.msra.mxu0 0.0
        %842 = vmatprep.subr.mxu0 0.0
        %843 = vmatpush1.msra.mxu0 0.0
        %844 = vmatprep.subr.mxu0 0.0
        %845 = vmatpush1.msra.mxu0 0.0
        %846 = vmatprep.subr.mxu0 0.0
        %847 = vmatpush1.msra.mxu0 0.0
        %848 = vmatprep.mubr.f32.mxu0 0.0
        %v849 = vand.u32 %v415, 4294901760
        %850 = vmatmul.mubr.f32.gmra.mrb[0].mxu0 %v849
        %v851 = vpop.f32.mrb[0].mxu0
        %v852 = vadd.f32 %v762, %v851
        %v853 = vpop.f32.mrb[0].mxu0
        %v854 = vadd.f32 %v764, %v853
        %855 = vdwg.mxu0
        %v856 = vand.u32 %v364, 4294901760
        %857 = vmatprep.subr.mxu0 %v856
        %v858 = vand.u32 %v363, 4294901760
        %859 = vmatpush1.msra.mxu0 %v858
        %v860 = vand.u32 %v368, 4294901760
        %861 = vmatprep.subr.mxu0 %v860
        %v862 = vand.u32 %v367, 4294901760
        %863 = vmatpush1.msra.mxu0 %v862
        %v864 = vand.u32 %v372, 4294901760
        %865 = vmatprep.subr.mxu0 %v864
        %v866 = vand.u32 %v371, 4294901760
        %867 = vmatpush1.msra.mxu0 %v866
        %868 = vmatprep.subr.mxu0 0.0
        %869 = vmatpush1.msra.mxu0 0.0
        %870 = vmatprep.subr.mxu0 0.0
        %871 = vmatpush1.msra.mxu0 0.0
        %872 = vmatprep.subr.mxu0 0.0
        %873 = vmatpush1.msra.mxu0 0.0
        %874 = vmatprep.subr.mxu0 0.0
        %875 = vmatpush1.msra.mxu0 0.0
        %876 = vmatprep.subr.mxu0 0.0
        %877 = vmatpush1.msra.mxu0 0.0
        %878 = vmatprep.subr.mxu0 0.0
        %879 = vmatpush1.msra.mxu0 0.0
        %880 = vmatprep.subr.mxu0 0.0
        %881 = vmatpush1.msra.mxu0 0.0
        %882 = vmatprep.subr.mxu0 0.0
        %883 = vmatpush1.msra.mxu0 0.0
        %884 = vmatprep.subr.mxu0 0.0
        %885 = vmatpush1.msra.mxu0 0.0
        %886 = vmatprep.subr.mxu0 0.0
        %887 = vmatpush1.msra.mxu0 0.0
        %888 = vmatprep.subr.mxu0 0.0
        %889 = vmatpush1.msra.mxu0 0.0
        %890 = vmatprep.subr.mxu0 0.0
        %891 = vmatpush1.msra.mxu0 0.0
        %892 = vmatprep.subr.mxu0 0.0
        %893 = vmatpush1.msra.mxu0 0.0
        %894 = vmatprep.subr.mxu0 0.0
        %895 = vmatpush1.msra.mxu0 0.0
        %896 = vmatprep.subr.mxu0 0.0
        %897 = vmatpush1.msra.mxu0 0.0
        %898 = vmatprep.subr.mxu0 0.0
        %899 = vmatpush1.msra.mxu0 0.0
        %900 = vmatprep.subr.mxu0 0.0
        %901 = vmatpush1.msra.mxu0 0.0
        %902 = vmatprep.subr.mxu0 0.0
        %903 = vmatpush1.msra.mxu0 0.0
        %904 = vmatprep.subr.mxu0 0.0
        %905 = vmatpush1.msra.mxu0 0.0
        %906 = vmatprep.subr.mxu0 0.0
        %907 = vmatpush1.msra.mxu0 0.0
        %908 = vmatprep.subr.mxu0 0.0
        %909 = vmatpush1.msra.mxu0 0.0
        %910 = vmatprep.subr.mxu0 0.0
        %911 = vmatpush1.msra.mxu0 0.0
        %912 = vmatprep.subr.mxu0 0.0
        %913 = vmatpush1.msra.mxu0 0.0
        %914 = vmatprep.subr.mxu0 0.0
        %915 = vmatpush1.msra.mxu0 0.0
        %916 = vmatprep.subr.mxu0 0.0
        %917 = vmatpush1.msra.mxu0 0.0
        %918 = vmatprep.subr.mxu0 0.0
        %919 = vmatpush1.msra.mxu0 0.0
        %920 = vmatprep.subr.mxu0 0.0
        %921 = vmatpush1.msra.mxu0 0.0
        %922 = vmatprep.subr.mxu0 0.0
        %923 = vmatpush1.msra.mxu0 0.0
        %924 = vmatprep.subr.mxu0 0.0
        %925 = vmatpush1.msra.mxu0 0.0
        %926 = vmatprep.mubr.f32.mxu0 0.0
        %v927 = vand.u32 %v415, 4294901760
        %928 = vmatmul.mubr.f32.gmra.mrb[0].mxu0 %v927
        %v929 = vpop.f32.mrb[0].mxu0
        %v930 = vadd.f32 %v852, %v929
        %v931 = vpop.f32.mrb[0].mxu0
        %v932 = vadd.f32 %v854, %v931
        %933 = vdwg.mxu0
        %v934 = vand.u32 %v366, 4294901760
        %935 = vmatprep.subr.mxu0 %v934
        %v936 = vand.u32 %v365, 4294901760
        %937 = vmatpush1.msra.mxu0 %v936
        %v938 = vand.u32 %v370, 4294901760
        %939 = vmatprep.subr.mxu0 %v938
        %v940 = vand.u32 %v369, 4294901760
        %941 = vmatpush1.msra.mxu0 %v940
        %v942 = vand.u32 %v374, 4294901760
        %943 = vmatprep.subr.mxu0 %v942
        %v944 = vand.u32 %v373, 4294901760
        %945 = vmatpush1.msra.mxu0 %v944
        %946 = vmatprep.subr.mxu0 0.0
        %947 = vmatpush1.msra.mxu0 0.0
        %948 = vmatprep.subr.mxu0 0.0
        %949 = vmatpush1.msra.mxu0 0.0
        %950 = vmatprep.subr.mxu0 0.0
        %951 = vmatpush1.msra.mxu0 0.0
        %952 = vmatprep.subr.mxu0 0.0
        %953 = vmatpush1.msra.mxu0 0.0
        %954 = vmatprep.subr.mxu0 0.0
        %955 = vmatpush1.msra.mxu0 0.0
        %956 = vmatprep.subr.mxu0 0.0
        %957 = vmatpush1.msra.mxu0 0.0
        %958 = vmatprep.subr.mxu0 0.0
        %959 = vmatpush1.msra.mxu0 0.0
        %960 = vmatprep.subr.mxu0 0.0
        %961 = vmatpush1.msra.mxu0 0.0
        %962 = vmatprep.subr.mxu0 0.0
        %963 = vmatpush1.msra.mxu0 0.0
        %964 = vmatprep.subr.mxu0 0.0
        %965 = vmatpush1.msra.mxu0 0.0
        %966 = vmatprep.subr.mxu0 0.0
        %967 = vmatpush1.msra.mxu0 0.0
        %968 = vmatprep.subr.mxu0 0.0
        %969 = vmatpush1.msra.mxu0 0.0
        %970 = vmatprep.subr.mxu0 0.0
        %971 = vmatpush1.msra.mxu0 0.0
        %972 = vmatprep.subr.mxu0 0.0
        %973 = vmatpush1.msra.mxu0 0.0
        %974 = vmatprep.subr.mxu0 0.0
        %975 = vmatpush1.msra.mxu0 0.0
        %976 = vmatprep.subr.mxu0 0.0
        %977 = vmatpush1.msra.mxu0 0.0
        %978 = vmatprep.subr.mxu0 0.0
        %979 = vmatpush1.msra.mxu0 0.0
        %980 = vmatprep.subr.mxu0 0.0
        %981 = vmatpush1.msra.mxu0 0.0
        %982 = vmatprep.subr.mxu0 0.0
        %983 = vmatpush1.msra.mxu0 0.0
        %984 = vmatprep.subr.mxu0 0.0
        %985 = vmatpush1.msra.mxu0 0.0
        %986 = vmatprep.subr.mxu0 0.0
        %987 = vmatpush1.msra.mxu0 0.0
        %988 = vmatprep.subr.mxu0 0.0
        %989 = vmatpush1.msra.mxu0 0.0
        %990 = vmatprep.subr.mxu0 0.0
        %991 = vmatpush1.msra.mxu0 0.0
        %992 = vmatprep.subr.mxu0 0.0
        %993 = vmatpush1.msra.mxu0 0.0
        %994 = vmatprep.subr.mxu0 0.0
        %995 = vmatpush1.msra.mxu0 0.0
        %996 = vmatprep.subr.mxu0 0.0
        %997 = vmatpush1.msra.mxu0 0.0
        %998 = vmatprep.subr.mxu0 0.0
        %999 = vmatpush1.msra.mxu0 0.0
        %1000 = vmatprep.subr.mxu0 0.0
        %1001 = vmatpush1.msra.mxu0 0.0
        %1002 = vmatprep.subr.mxu0 0.0
        %1003 = vmatpush1.msra.mxu0 0.0
        %1004 = vmatprep.mubr.f32.mxu0 0.0
        %v1005 = vand.u32 %v415, 4294901760
        %v1006 = vsub.f32 %v415, %v1005
        %v1007 = vand.u32 %v1006, 4294901760
        %v1008 = vsub.f32 %v1006, %v1007
        %v1009 = vand.u32 %v1008, 4294901760
        %1010 = vmatmul.mubr.f32.gmra.mrb[0].mxu0 %v1009
        %v1011 = vpop.f32.mrb[0].mxu0
        %v1012 = vadd.f32 0.0, %v1011
        %v1013 = vpop.f32.mrb[0].mxu0
        %v1014 = vadd.f32 0.0, %v1013
        %1015 = vdwg.mxu0
        %v1016 = vand.u32 %v366, 4294901760
        %v1017 = vsub.f32 %v366, %v1016
        %v1018 = vand.u32 %v1017, 4294901760
        %v1019 = vsub.f32 %v1017, %v1018
        %v1020 = vand.u32 %v1019, 4294901760
        %1021 = vmatprep.subr.mxu0 %v1020
        %v1022 = vand.u32 %v365, 4294901760
        %v1023 = vsub.f32 %v365, %v1022
        %v1024 = vand.u32 %v1023, 4294901760
        %v1025 = vsub.f32 %v1023, %v1024
        %v1026 = vand.u32 %v1025, 4294901760
        %1027 = vmatpush1.msra.mxu0 %v1026
        %v1028 = vand.u32 %v370, 4294901760
        %v1029 = vsub.f32 %v370, %v1028
        %v1030 = vand.u32 %v1029, 4294901760
        %v1031 = vsub.f32 %v1029, %v1030
        %v1032 = vand.u32 %v1031, 4294901760
        %1033 = vmatprep.subr.mxu0 %v1032
        %v1034 = vand.u32 %v369, 4294901760
        %v1035 = vsub.f32 %v369, %v1034
        %v1036 = vand.u32 %v1035, 4294901760
        %v1037 = vsub.f32 %v1035, %v1036
        %v1038 = vand.u32 %v1037, 4294901760
        %1039 = vmatpush1.msra.mxu0 %v1038
        %v1040 = vand.u32 %v374, 4294901760
        %v1041 = vsub.f32 %v374, %v1040
        %v1042 = vand.u32 %v1041, 4294901760
        %v1043 = vsub.f32 %v1041, %v1042
        %v1044 = vand.u32 %v1043, 4294901760
        %1045 = vmatprep.subr.mxu0 %v1044
        %v1046 = vand.u32 %v373, 4294901760
        %v1047 = vsub.f32 %v373, %v1046
        %v1048 = vand.u32 %v1047, 4294901760
        %v1049 = vsub.f32 %v1047, %v1048
        %v1050 = vand.u32 %v1049, 4294901760
        %1051 = vmatpush1.msra.mxu0 %v1050
        %1052 = vmatprep.subr.mxu0 0.0
        %1053 = vmatpush1.msra.mxu0 0.0
        %1054 = vmatprep.subr.mxu0 0.0
        %1055 = vmatpush1.msra.mxu0 0.0
        %1056 = vmatprep.subr.mxu0 0.0
        %1057 = vmatpush1.msra.mxu0 0.0
        %1058 = vmatprep.subr.mxu0 0.0
        %1059 = vmatpush1.msra.mxu0 0.0
        %1060 = vmatprep.subr.mxu0 0.0
        %1061 = vmatpush1.msra.mxu0 0.0
        %1062 = vmatprep.subr.mxu0 0.0
        %1063 = vmatpush1.msra.mxu0 0.0
        %1064 = vmatprep.subr.mxu0 0.0
        %1065 = vmatpush1.msra.mxu0 0.0
        %1066 = vmatprep.subr.mxu0 0.0
        %1067 = vmatpush1.msra.mxu0 0.0
        %1068 = vmatprep.subr.mxu0 0.0
        %1069 = vmatpush1.msra.mxu0 0.0
        %1070 = vmatprep.subr.mxu0 0.0
        %1071 = vmatpush1.msra.mxu0 0.0
        %1072 = vmatprep.subr.mxu0 0.0
        %1073 = vmatpush1.msra.mxu0 0.0
        %1074 = vmatprep.subr.mxu0 0.0
        %1075 = vmatpush1.msra.mxu0 0.0
        %1076 = vmatprep.subr.mxu0 0.0
        %1077 = vmatpush1.msra.mxu0 0.0
        %1078 = vmatprep.subr.mxu0 0.0
        %1079 = vmatpush1.msra.mxu0 0.0
        %1080 = vmatprep.subr.mxu0 0.0
        %1081 = vmatpush1.msra.mxu0 0.0
        %1082 = vmatprep.subr.mxu0 0.0
        %1083 = vmatpush1.msra.mxu0 0.0
        %1084 = vmatprep.subr.mxu0 0.0
        %1085 = vmatpush1.msra.mxu0 0.0
        %1086 = vmatprep.subr.mxu0 0.0
        %1087 = vmatpush1.msra.mxu0 0.0
        %1088 = vmatprep.subr.mxu0 0.0
        %1089 = vmatpush1.msra.mxu0 0.0
        %1090 = vmatprep.subr.mxu0 0.0
        %1091 = vmatpush1.msra.mxu0 0.0
        %1092 = vmatprep.subr.mxu0 0.0
        %1093 = vmatpush1.msra.mxu0 0.0
        %1094 = vmatprep.subr.mxu0 0.0
        %1095 = vmatpush1.msra.mxu0 0.0
        %1096 = vmatprep.subr.mxu0 0.0
        %1097 = vmatpush1.msra.mxu0 0.0
        %1098 = vmatprep.subr.mxu0 0.0
        %1099 = vmatpush1.msra.mxu0 0.0
        %1100 = vmatprep.subr.mxu0 0.0
        %1101 = vmatpush1.msra.mxu0 0.0
        %1102 = vmatprep.subr.mxu0 0.0
        %1103 = vmatpush1.msra.mxu0 0.0
        %1104 = vmatprep.subr.mxu0 0.0
        %1105 = vmatpush1.msra.mxu0 0.0
        %1106 = vmatprep.subr.mxu0 0.0
        %1107 = vmatpush1.msra.mxu0 0.0
        %1108 = vmatprep.subr.mxu0 0.0
        %1109 = vmatpush1.msra.mxu0 0.0
        %1110 = vmatprep.mubr.f32.mxu0 0.0
        %v1111 = vand.u32 %v415, 4294901760
        %1112 = vmatmul.mubr.f32.gmra.mrb[0].mxu0 %v1111
        %v1113 = vpop.f32.mrb[0].mxu0
        %v1114 = vadd.f32 %v1012, %v1113
        %v1115 = vpop.f32.mrb[0].mxu0
        %v1116 = vadd.f32 %v1014, %v1115
        %1117 = vdwg.mxu0
        %v1118 = vand.u32 %v366, 4294901760
        %v1119 = vsub.f32 %v366, %v1118
        %1120 = vmatprep.subr.mxu0 %v1119
        %v1121 = vand.u32 %v365, 4294901760
        %v1122 = vsub.f32 %v365, %v1121
        %1123 = vmatpush1.msra.mxu0 %v1122
        %v1124 = vand.u32 %v370, 4294901760
        %v1125 = vsub.f32 %v370, %v1124
        %1126 = vmatprep.subr.mxu0 %v1125
        %v1127 = vand.u32 %v369, 4294901760
        %v1128 = vsub.f32 %v369, %v1127
        %1129 = vmatpush1.msra.mxu0 %v1128
        %v1130 = vand.u32 %v374, 4294901760
        %v1131 = vsub.f32 %v374, %v1130
        %1132 = vmatprep.subr.mxu0 %v1131
        %v1133 = vand.u32 %v373, 4294901760
        %v1134 = vsub.f32 %v373, %v1133
        %1135 = vmatpush1.msra.mxu0 %v1134
        %1136 = vmatprep.subr.mxu0 0.0
        %1137 = vmatpush1.msra.mxu0 0.0
        %1138 = vmatprep.subr.mxu0 0.0
        %1139 = vmatpush1.msra.mxu0 0.0
        %1140 = vmatprep.subr.mxu0 0.0
        %1141 = vmatpush1.msra.mxu0 0.0
        %1142 = vmatprep.subr.mxu0 0.0
        %1143 = vmatpush1.msra.mxu0 0.0
        %1144 = vmatprep.subr.mxu0 0.0
        %1145 = vmatpush1.msra.mxu0 0.0
        %1146 = vmatprep.subr.mxu0 0.0
        %1147 = vmatpush1.msra.mxu0 0.0
        %1148 = vmatprep.subr.mxu0 0.0
        %1149 = vmatpush1.msra.mxu0 0.0
        %1150 = vmatprep.subr.mxu0 0.0
        %1151 = vmatpush1.msra.mxu0 0.0
        %1152 = vmatprep.subr.mxu0 0.0
        %1153 = vmatpush1.msra.mxu0 0.0
        %1154 = vmatprep.subr.mxu0 0.0
        %1155 = vmatpush1.msra.mxu0 0.0
        %1156 = vmatprep.subr.mxu0 0.0
        %1157 = vmatpush1.msra.mxu0 0.0
        %1158 = vmatprep.subr.mxu0 0.0
        %1159 = vmatpush1.msra.mxu0 0.0
        %1160 = vmatprep.subr.mxu0 0.0
        %1161 = vmatpush1.msra.mxu0 0.0
        %1162 = vmatprep.subr.mxu0 0.0
        %1163 = vmatpush1.msra.mxu0 0.0
        %1164 = vmatprep.subr.mxu0 0.0
        %1165 = vmatpush1.msra.mxu0 0.0
        %1166 = vmatprep.subr.mxu0 0.0
        %1167 = vmatpush1.msra.mxu0 0.0
        %1168 = vmatprep.subr.mxu0 0.0
        %1169 = vmatpush1.msra.mxu0 0.0
        %1170 = vmatprep.subr.mxu0 0.0
        %1171 = vmatpush1.msra.mxu0 0.0
        %1172 = vmatprep.subr.mxu0 0.0
        %1173 = vmatpush1.msra.mxu0 0.0
        %1174 = vmatprep.subr.mxu0 0.0
        %1175 = vmatpush1.msra.mxu0 0.0
        %1176 = vmatprep.subr.mxu0 0.0
        %1177 = vmatpush1.msra.mxu0 0.0
        %1178 = vmatprep.subr.mxu0 0.0
        %1179 = vmatpush1.msra.mxu0 0.0
        %1180 = vmatprep.subr.mxu0 0.0
        %1181 = vmatpush1.msra.mxu0 0.0
        %1182 = vmatprep.subr.mxu0 0.0
        %1183 = vmatpush1.msra.mxu0 0.0
        %1184 = vmatprep.subr.mxu0 0.0
        %1185 = vmatpush1.msra.mxu0 0.0
        %1186 = vmatprep.subr.mxu0 0.0
        %1187 = vmatpush1.msra.mxu0 0.0
        %1188 = vmatprep.subr.mxu0 0.0
        %1189 = vmatpush1.msra.mxu0 0.0
        %1190 = vmatprep.subr.mxu0 0.0
        %1191 = vmatpush1.msra.mxu0 0.0
        %1192 = vmatprep.subr.mxu0 0.0
        %1193 = vmatpush1.msra.mxu0 0.0
        %1194 = vmatprep.mubr.f32.mxu0 0.0
        %v1195 = vand.u32 %v415, 4294901760
        %v1196 = vsub.f32 %v415, %v1195
        %1197 = vmatmul.mubr.f32.gmra.mrb[0].mxu0 %v1196
        %v1198 = vpop.f32.mrb[0].mxu0
        %v1199 = vadd.f32 %v1114, %v1198
        %v1200 = vpop.f32.mrb[0].mxu0
        %v1201 = vadd.f32 %v1116, %v1200
        %1202 = vdwg.mxu0
        %v1203 = vand.u32 %v366, 4294901760
        %1204 = vmatprep.subr.mxu0 %v1203
        %v1205 = vand.u32 %v365, 4294901760
        %1206 = vmatpush1.msra.mxu0 %v1205
        %v1207 = vand.u32 %v370, 4294901760
        %1208 = vmatprep.subr.mxu0 %v1207
        %v1209 = vand.u32 %v369, 4294901760
        %1210 = vmatpush1.msra.mxu0 %v1209
        %v1211 = vand.u32 %v374, 4294901760
        %1212 = vmatprep.subr.mxu0 %v1211
        %v1213 = vand.u32 %v373, 4294901760
        %1214 = vmatpush1.msra.mxu0 %v1213
        %1215 = vmatprep.subr.mxu0 0.0
        %1216 = vmatpush1.msra.mxu0 0.0
        %1217 = vmatprep.subr.mxu0 0.0
        %1218 = vmatpush1.msra.mxu0 0.0
        %1219 = vmatprep.subr.mxu0 0.0
        %1220 = vmatpush1.msra.mxu0 0.0
        %1221 = vmatprep.subr.mxu0 0.0
        %1222 = vmatpush1.msra.mxu0 0.0
        %1223 = vmatprep.subr.mxu0 0.0
        %1224 = vmatpush1.msra.mxu0 0.0
        %1225 = vmatprep.subr.mxu0 0.0
        %1226 = vmatpush1.msra.mxu0 0.0
        %1227 = vmatprep.subr.mxu0 0.0
        %1228 = vmatpush1.msra.mxu0 0.0
        %1229 = vmatprep.subr.mxu0 0.0
        %1230 = vmatpush1.msra.mxu0 0.0
        %1231 = vmatprep.subr.mxu0 0.0
        %1232 = vmatpush1.msra.mxu0 0.0
        %1233 = vmatprep.subr.mxu0 0.0
        %1234 = vmatpush1.msra.mxu0 0.0
        %1235 = vmatprep.subr.mxu0 0.0
        %1236 = vmatpush1.msra.mxu0 0.0
        %1237 = vmatprep.subr.mxu0 0.0
        %1238 = vmatpush1.msra.mxu0 0.0
        %1239 = vmatprep.subr.mxu0 0.0
        %1240 = vmatpush1.msra.mxu0 0.0
        %1241 = vmatprep.subr.mxu0 0.0
        %1242 = vmatpush1.msra.mxu0 0.0
        %1243 = vmatprep.subr.mxu0 0.0
        %1244 = vmatpush1.msra.mxu0 0.0
        %1245 = vmatprep.subr.mxu0 0.0
        %1246 = vmatpush1.msra.mxu0 0.0
        %1247 = vmatprep.subr.mxu0 0.0
        %1248 = vmatpush1.msra.mxu0 0.0
        %1249 = vmatprep.subr.mxu0 0.0
        %1250 = vmatpush1.msra.mxu0 0.0
        %1251 = vmatprep.subr.mxu0 0.0
        %1252 = vmatpush1.msra.mxu0 0.0
        %1253 = vmatprep.subr.mxu0 0.0
        %1254 = vmatpush1.msra.mxu0 0.0
        %1255 = vmatprep.subr.mxu0 0.0
        %1256 = vmatpush1.msra.mxu0 0.0
        %1257 = vmatprep.subr.mxu0 0.0
        %1258 = vmatpush1.msra.mxu0 0.0
        %1259 = vmatprep.subr.mxu0 0.0
        %1260 = vmatpush1.msra.mxu0 0.0
        %1261 = vmatprep.subr.mxu0 0.0
        %1262 = vmatpush1.msra.mxu0 0.0
        %1263 = vmatprep.subr.mxu0 0.0
        %1264 = vmatpush1.msra.mxu0 0.0
        %1265 = vmatprep.subr.mxu0 0.0
        %1266 = vmatpush1.msra.mxu0 0.0
        %1267 = vmatprep.subr.mxu0 0.0
        %1268 = vmatpush1.msra.mxu0 0.0
        %1269 = vmatprep.subr.mxu0 0.0
        %1270 = vmatpush1.msra.mxu0 0.0
        %1271 = vmatprep.subr.mxu0 0.0
        %1272 = vmatpush1.msra.mxu0 0.0
        %1273 = vmatprep.mubr.f32.mxu0 0.0
        %v1274 = vand.u32 %v415, 4294901760
        %v1275 = vsub.f32 %v415, %v1274
        %v1276 = vand.u32 %v1275, 4294901760
        %1277 = vmatmul.mubr.f32.gmra.mrb[0].mxu0 %v1276
        %v1278 = vpop.f32.mrb[0].mxu0
        %v1279 = vadd.f32 %v1199, %v1278
        %v1280 = vpop.f32.mrb[0].mxu0
        %v1281 = vadd.f32 %v1201, %v1280
        %1282 = vdwg.mxu0
        %v1283 = vand.u32 %v366, 4294901760
        %v1284 = vsub.f32 %v366, %v1283
        %v1285 = vand.u32 %v1284, 4294901760
        %1286 = vmatprep.subr.mxu0 %v1285
        %v1287 = vand.u32 %v365, 4294901760
        %v1288 = vsub.f32 %v365, %v1287
        %v1289 = vand.u32 %v1288, 4294901760
        %1290 = vmatpush1.msra.mxu0 %v1289
        %v1291 = vand.u32 %v370, 4294901760
        %v1292 = vsub.f32 %v370, %v1291
        %v1293 = vand.u32 %v1292, 4294901760
        %1294 = vmatprep.subr.mxu0 %v1293
        %v1295 = vand.u32 %v369, 4294901760
        %v1296 = vsub.f32 %v369, %v1295
        %v1297 = vand.u32 %v1296, 4294901760
        %1298 = vmatpush1.msra.mxu0 %v1297
        %v1299 = vand.u32 %v374, 4294901760
        %v1300 = vsub.f32 %v374, %v1299
        %v1301 = vand.u32 %v1300, 4294901760
        %1302 = vmatprep.subr.mxu0 %v1301
        %v1303 = vand.u32 %v373, 4294901760
        %v1304 = vsub.f32 %v373, %v1303
        %v1305 = vand.u32 %v1304, 4294901760
        %1306 = vmatpush1.msra.mxu0 %v1305
        %1307 = vmatprep.subr.mxu0 0.0
        %1308 = vmatpush1.msra.mxu0 0.0
        %1309 = vmatprep.subr.mxu0 0.0
        %1310 = vmatpush1.msra.mxu0 0.0
        %1311 = vmatprep.subr.mxu0 0.0
        %1312 = vmatpush1.msra.mxu0 0.0
        %1313 = vmatprep.subr.mxu0 0.0
        %1314 = vmatpush1.msra.mxu0 0.0
        %1315 = vmatprep.subr.mxu0 0.0
        %1316 = vmatpush1.msra.mxu0 0.0
        %1317 = vmatprep.subr.mxu0 0.0
        %1318 = vmatpush1.msra.mxu0 0.0
        %1319 = vmatprep.subr.mxu0 0.0
        %1320 = vmatpush1.msra.mxu0 0.0
        %1321 = vmatprep.subr.mxu0 0.0
        %1322 = vmatpush1.msra.mxu0 0.0
        %1323 = vmatprep.subr.mxu0 0.0
        %1324 = vmatpush1.msra.mxu0 0.0
        %1325 = vmatprep.subr.mxu0 0.0
        %1326 = vmatpush1.msra.mxu0 0.0
        %1327 = vmatprep.subr.mxu0 0.0
        %1328 = vmatpush1.msra.mxu0 0.0
        %1329 = vmatprep.subr.mxu0 0.0
        %1330 = vmatpush1.msra.mxu0 0.0
        %1331 = vmatprep.subr.mxu0 0.0
        %1332 = vmatpush1.msra.mxu0 0.0
        %1333 = vmatprep.subr.mxu0 0.0
        %1334 = vmatpush1.msra.mxu0 0.0
        %1335 = vmatprep.subr.mxu0 0.0
        %1336 = vmatpush1.msra.mxu0 0.0
        %1337 = vmatprep.subr.mxu0 0.0
        %1338 = vmatpush1.msra.mxu0 0.0
        %1339 = vmatprep.subr.mxu0 0.0
        %1340 = vmatpush1.msra.mxu0 0.0
        %1341 = vmatprep.subr.mxu0 0.0
        %1342 = vmatpush1.msra.mxu0 0.0
        %1343 = vmatprep.subr.mxu0 0.0
        %1344 = vmatpush1.msra.mxu0 0.0
        %1345 = vmatprep.subr.mxu0 0.0
        %1346 = vmatpush1.msra.mxu0 0.0
        %1347 = vmatprep.subr.mxu0 0.0
        %1348 = vmatpush1.msra.mxu0 0.0
        %1349 = vmatprep.subr.mxu0 0.0
        %1350 = vmatpush1.msra.mxu0 0.0
        %1351 = vmatprep.subr.mxu0 0.0
        %1352 = vmatpush1.msra.mxu0 0.0
        %1353 = vmatprep.subr.mxu0 0.0
        %1354 = vmatpush1.msra.mxu0 0.0
        %1355 = vmatprep.subr.mxu0 0.0
        %1356 = vmatpush1.msra.mxu0 0.0
        %1357 = vmatprep.subr.mxu0 0.0
        %1358 = vmatpush1.msra.mxu0 0.0
        %1359 = vmatprep.subr.mxu0 0.0
        %1360 = vmatpush1.msra.mxu0 0.0
        %1361 = vmatprep.subr.mxu0 0.0
        %1362 = vmatpush1.msra.mxu0 0.0
        %1363 = vmatprep.subr.mxu0 0.0
        %1364 = vmatpush1.msra.mxu0 0.0
        %1365 = vmatprep.mubr.f32.mxu0 0.0
        %v1366 = vand.u32 %v415, 4294901760
        %1367 = vmatmul.mubr.f32.gmra.mrb[0].mxu0 %v1366
        %v1368 = vpop.f32.mrb[0].mxu0
        %v1369 = vadd.f32 %v1279, %v1368
        %v1370 = vpop.f32.mrb[0].mxu0
        %v1371 = vadd.f32 %v1281, %v1370
        %1372 = vdwg.mxu0
        %v1373 = vand.u32 %v366, 4294901760
        %1374 = vmatprep.subr.mxu0 %v1373
        %v1375 = vand.u32 %v365, 4294901760
        %1376 = vmatpush1.msra.mxu0 %v1375
        %v1377 = vand.u32 %v370, 4294901760
        %1378 = vmatprep.subr.mxu0 %v1377
        %v1379 = vand.u32 %v369, 4294901760
        %1380 = vmatpush1.msra.mxu0 %v1379
        %v1381 = vand.u32 %v374, 4294901760
        %1382 = vmatprep.subr.mxu0 %v1381
        %v1383 = vand.u32 %v373, 4294901760
        %1384 = vmatpush1.msra.mxu0 %v1383
        %1385 = vmatprep.subr.mxu0 0.0
        %1386 = vmatpush1.msra.mxu0 0.0
        %1387 = vmatprep.subr.mxu0 0.0
        %1388 = vmatpush1.msra.mxu0 0.0
        %1389 = vmatprep.subr.mxu0 0.0
        %1390 = vmatpush1.msra.mxu0 0.0
        %1391 = vmatprep.subr.mxu0 0.0
        %1392 = vmatpush1.msra.mxu0 0.0
        %1393 = vmatprep.subr.mxu0 0.0
        %1394 = vmatpush1.msra.mxu0 0.0
        %1395 = vmatprep.subr.mxu0 0.0
        %1396 = vmatpush1.msra.mxu0 0.0
        %1397 = vmatprep.subr.mxu0 0.0
        %1398 = vmatpush1.msra.mxu0 0.0
        %1399 = vmatprep.subr.mxu0 0.0
        %1400 = vmatpush1.msra.mxu0 0.0
        %1401 = vmatprep.subr.mxu0 0.0
        %1402 = vmatpush1.msra.mxu0 0.0
        %1403 = vmatprep.subr.mxu0 0.0
        %1404 = vmatpush1.msra.mxu0 0.0
        %1405 = vmatprep.subr.mxu0 0.0
        %1406 = vmatpush1.msra.mxu0 0.0
        %1407 = vmatprep.subr.mxu0 0.0
        %1408 = vmatpush1.msra.mxu0 0.0
        %1409 = vmatprep.subr.mxu0 0.0
        %1410 = vmatpush1.msra.mxu0 0.0
        %1411 = vmatprep.subr.mxu0 0.0
        %1412 = vmatpush1.msra.mxu0 0.0
        %1413 = vmatprep.subr.mxu0 0.0
        %1414 = vmatpush1.msra.mxu0 0.0
        %1415 = vmatprep.subr.mxu0 0.0
        %1416 = vmatpush1.msra.mxu0 0.0
        %1417 = vmatprep.subr.mxu0 0.0
        %1418 = vmatpush1.msra.mxu0 0.0
        %1419 = vmatprep.subr.mxu0 0.0
        %1420 = vmatpush1.msra.mxu0 0.0
        %1421 = vmatprep.subr.mxu0 0.0
        %1422 = vmatpush1.msra.mxu0 0.0
        %1423 = vmatprep.subr.mxu0 0.0
        %1424 = vmatpush1.msra.mxu0 0.0
        %1425 = vmatprep.subr.mxu0 0.0
        %1426 = vmatpush1.msra.mxu0 0.0
        %1427 = vmatprep.subr.mxu0 0.0
        %1428 = vmatpush1.msra.mxu0 0.0
        %1429 = vmatprep.subr.mxu0 0.0
        %1430 = vmatpush1.msra.mxu0 0.0
        %1431 = vmatprep.subr.mxu0 0.0
        %1432 = vmatpush1.msra.mxu0 0.0
        %1433 = vmatprep.subr.mxu0 0.0
        %1434 = vmatpush1.msra.mxu0 0.0
        %1435 = vmatprep.subr.mxu0 0.0
        %1436 = vmatpush1.msra.mxu0 0.0
        %1437 = vmatprep.subr.mxu0 0.0
        %1438 = vmatpush1.msra.mxu0 0.0
        %1439 = vmatprep.subr.mxu0 0.0
        %1440 = vmatpush1.msra.mxu0 0.0
        %1441 = vmatprep.subr.mxu0 0.0
        %1442 = vmatpush1.msra.mxu0 0.0
        %1443 = vmatprep.mubr.f32.mxu0 0.0
        %v1444 = vand.u32 %v415, 4294901760
        %1445 = vmatmul.mubr.f32.gmra.mrb[0].mxu0 %v1444
        %v1446 = vpop.f32.mrb[0].mxu0
        %v1447 = vadd.f32 %v1369, %v1446
        %v1448 = vpop.f32.mrb[0].mxu0
        %v1449 = vadd.f32 %v1371, %v1448
        %1450 = vdwg.mxu0
        %1451 = vxpose.xlu0.b32.start [1/16] %v375, 128
        %1452 = vxpose.xlu0.b32.cont [2/16] %v376, 128
        %1453 = vxpose.xlu0.b32.cont [3/16] %v377, 128
        %1454 = vxpose.xlu0.b32.cont [4/16] 0.0, 128
        %1455 = vxpose.xlu0.b32.cont [5/16] 0.0, 128
        %1456 = vxpose.xlu0.b32.cont [6/16] 0.0, 128
        %1457 = vxpose.xlu0.b32.cont [7/16] 0.0, 128
        %1458 = vxpose.xlu0.b32.cont [8/16] 0.0, 128
        %1459 = vxpose.xlu0.b32.cont [9/16] 0.0, 128
        %1460 = vxpose.xlu0.b32.cont [10/16] 0.0, 128
        %1461 = vxpose.xlu0.b32.cont [11/16] 0.0, 128
        %1462 = vxpose.xlu0.b32.cont [12/16] 0.0, 128
        %1463 = vxpose.xlu0.b32.cont [13/16] 0.0, 128
        %1464 = vxpose.xlu0.b32.cont [14/16] 0.0, 128
        %1465 = vxpose.xlu0.b32.cont [15/16] 0.0, 128
        %1466 = vxpose.xlu0.b32.end [16/16] 0.0, 128
        %v1467 = vpop.trf.xlu0
        %v1468 = vpop.trf.xlu0
        %v1469 = vpop.trf.xlu0
        %v1470 = vpop.trf.xlu0
        %v1471 = vpop.trf.xlu0
        %v1472 = vpop.trf.xlu0
        %v1473 = vpop.trf.xlu0
        %v1474 = vpop.trf.xlu0
        %v1475 = vpop.trf.xlu0
        %v1476 = vpop.trf.xlu0
        %v1477 = vpop.trf.xlu0
        %v1478 = vpop.trf.xlu0
        %v1479 = vpop.trf.xlu0
        %v1480 = vpop.trf.xlu0
        %v1481 = vpop.trf.xlu0
        %v1482 = vpop.trf.xlu0
        %v1484 = vsel %vm413, %v1467, 0
        %v1486 = vand.u32 %v325, 4294901760
        %1487 = vmatprep.subr.mxu0 %v1486
        %v1488 = vand.u32 %v324, 4294901760
        %1489 = vmatpush1.msra.mxu0 %v1488
        %v1490 = vand.u32 %v329, 4294901760
        %1491 = vmatprep.subr.mxu0 %v1490
        %v1492 = vand.u32 %v328, 4294901760
        %1493 = vmatpush1.msra.mxu0 %v1492
        %v1494 = vand.u32 %v333, 4294901760
        %1495 = vmatprep.subr.mxu0 %v1494
        %v1496 = vand.u32 %v332, 4294901760
        %1497 = vmatpush1.msra.mxu0 %v1496
        %1498 = vmatprep.subr.mxu0 0.0
        %1499 = vmatpush1.msra.mxu0 0.0
        %1500 = vmatprep.subr.mxu0 0.0
        %1501 = vmatpush1.msra.mxu0 0.0
        %1502 = vmatprep.subr.mxu0 0.0
        %1503 = vmatpush1.msra.mxu0 0.0
        %1504 = vmatprep.subr.mxu0 0.0
        %1505 = vmatpush1.msra.mxu0 0.0
        %1506 = vmatprep.subr.mxu0 0.0
        %1507 = vmatpush1.msra.mxu0 0.0
        %1508 = vmatprep.subr.mxu0 0.0
        %1509 = vmatpush1.msra.mxu0 0.0
        %1510 = vmatprep.subr.mxu0 0.0
        %1511 = vmatpush1.msra.mxu0 0.0
        %1512 = vmatprep.subr.mxu0 0.0
        %1513 = vmatpush1.msra.mxu0 0.0
        %1514 = vmatprep.subr.mxu0 0.0
        %1515 = vmatpush1.msra.mxu0 0.0
        %1516 = vmatprep.subr.mxu0 0.0
        %1517 = vmatpush1.msra.mxu0 0.0
        %1518 = vmatprep.subr.mxu0 0.0
        %1519 = vmatpush1.msra.mxu0 0.0
        %1520 = vmatprep.subr.mxu0 0.0
        %1521 = vmatpush1.msra.mxu0 0.0
        %1522 = vmatprep.subr.mxu0 0.0
        %1523 = vmatpush1.msra.mxu0 0.0
        %1524 = vmatprep.subr.mxu0 0.0
        %1525 = vmatpush1.msra.mxu0 0.0
        %1526 = vmatprep.subr.mxu0 0.0
        %1527 = vmatpush1.msra.mxu0 0.0
        %1528 = vmatprep.subr.mxu0 0.0
        %1529 = vmatpush1.msra.mxu0 0.0
        %1530 = vmatprep.subr.mxu0 0.0
        %1531 = vmatpush1.msra.mxu0 0.0
        %1532 = vmatprep.subr.mxu0 0.0
        %1533 = vmatpush1.msra.mxu0 0.0
        %1534 = vmatprep.subr.mxu0 0.0
        %1535 = vmatpush1.msra.mxu0 0.0
        %1536 = vmatprep.subr.mxu0 0.0
        %1537 = vmatpush1.msra.mxu0 0.0
        %1538 = vmatprep.subr.mxu0 0.0
        %1539 = vmatpush1.msra.mxu0 0.0
        %1540 = vmatprep.subr.mxu0 0.0
        %1541 = vmatpush1.msra.mxu0 0.0
        %1542 = vmatprep.subr.mxu0 0.0
        %1543 = vmatpush1.msra.mxu0 0.0
        %1544 = vmatprep.subr.mxu0 0.0
        %1545 = vmatpush1.msra.mxu0 0.0
        %1546 = vmatprep.subr.mxu0 0.0
        %1547 = vmatpush1.msra.mxu0 0.0
        %1548 = vmatprep.subr.mxu0 0.0
        %1549 = vmatpush1.msra.mxu0 0.0
        %1550 = vmatprep.subr.mxu0 0.0
        %1551 = vmatpush1.msra.mxu0 0.0
        %1552 = vmatprep.subr.mxu0 0.0
        %1553 = vmatpush1.msra.mxu0 0.0
        %1554 = vmatprep.subr.mxu0 0.0
        %1555 = vmatpush1.msra.mxu0 0.0
        %1556 = vmatprep.mubr.f32.mxu0 0.0
        %v1557 = vand.u32 %v1484, 4294901760
        %v1558 = vsub.f32 %v1484, %v1557
        %v1559 = vand.u32 %v1558, 4294901760
        %v1560 = vsub.f32 %v1558, %v1559
        %v1561 = vand.u32 %v1560, 4294901760
        %1562 = vmatmul.mubr.f32.gmra.mrb[0].mxu0 %v1561
        %v1563 = vpop.f32.mrb[0].mxu0
        %v1564 = vadd.f32 %v930, %v1563
        %v1565 = vpop.f32.mrb[0].mxu0
        %v1566 = vadd.f32 %v932, %v1565
        %1567 = vdwg.mxu0
        %v1568 = vand.u32 %v325, 4294901760
        %v1569 = vsub.f32 %v325, %v1568
        %v1570 = vand.u32 %v1569, 4294901760
        %v1571 = vsub.f32 %v1569, %v1570
        %v1572 = vand.u32 %v1571, 4294901760
        %1573 = vmatprep.subr.mxu0 %v1572
        %v1574 = vand.u32 %v324, 4294901760
        %v1575 = vsub.f32 %v324, %v1574
        %v1576 = vand.u32 %v1575, 4294901760
        %v1577 = vsub.f32 %v1575, %v1576
        %v1578 = vand.u32 %v1577, 4294901760
        %1579 = vmatpush1.msra.mxu0 %v1578
        %v1580 = vand.u32 %v329, 4294901760
        %v1581 = vsub.f32 %v329, %v1580
        %v1582 = vand.u32 %v1581, 4294901760
        %v1583 = vsub.f32 %v1581, %v1582
        %v1584 = vand.u32 %v1583, 4294901760
        %1585 = vmatprep.subr.mxu0 %v1584
        %v1586 = vand.u32 %v328, 4294901760
        %v1587 = vsub.f32 %v328, %v1586
        %v1588 = vand.u32 %v1587, 4294901760
        %v1589 = vsub.f32 %v1587, %v1588
        %v1590 = vand.u32 %v1589, 4294901760
        %1591 = vmatpush1.msra.mxu0 %v1590
        %v1592 = vand.u32 %v333, 4294901760
        %v1593 = vsub.f32 %v333, %v1592
        %v1594 = vand.u32 %v1593, 4294901760
        %v1595 = vsub.f32 %v1593, %v1594
        %v1596 = vand.u32 %v1595, 4294901760
        %1597 = vmatprep.subr.mxu0 %v1596
        %v1598 = vand.u32 %v332, 4294901760
        %v1599 = vsub.f32 %v332, %v1598
        %v1600 = vand.u32 %v1599, 4294901760
        %v1601 = vsub.f32 %v1599, %v1600
        %v1602 = vand.u32 %v1601, 4294901760
        %1603 = vmatpush1.msra.mxu0 %v1602
        %1604 = vmatprep.subr.mxu0 0.0
        %1605 = vmatpush1.msra.mxu0 0.0
        %1606 = vmatprep.subr.mxu0 0.0
        %1607 = vmatpush1.msra.mxu0 0.0
        %1608 = vmatprep.subr.mxu0 0.0
        %1609 = vmatpush1.msra.mxu0 0.0
        %1610 = vmatprep.subr.mxu0 0.0
        %1611 = vmatpush1.msra.mxu0 0.0
        %1612 = vmatprep.subr.mxu0 0.0
        %1613 = vmatpush1.msra.mxu0 0.0
        %1614 = vmatprep.subr.mxu0 0.0
        %1615 = vmatpush1.msra.mxu0 0.0
        %1616 = vmatprep.subr.mxu0 0.0
        %1617 = vmatpush1.msra.mxu0 0.0
        %1618 = vmatprep.subr.mxu0 0.0
        %1619 = vmatpush1.msra.mxu0 0.0
        %1620 = vmatprep.subr.mxu0 0.0
        %1621 = vmatpush1.msra.mxu0 0.0
        %1622 = vmatprep.subr.mxu0 0.0
        %1623 = vmatpush1.msra.mxu0 0.0
        %1624 = vmatprep.subr.mxu0 0.0
        %1625 = vmatpush1.msra.mxu0 0.0
        %1626 = vmatprep.subr.mxu0 0.0
        %1627 = vmatpush1.msra.mxu0 0.0
        %1628 = vmatprep.subr.mxu0 0.0
        %1629 = vmatpush1.msra.mxu0 0.0
        %1630 = vmatprep.subr.mxu0 0.0
        %1631 = vmatpush1.msra.mxu0 0.0
        %1632 = vmatprep.subr.mxu0 0.0
        %1633 = vmatpush1.msra.mxu0 0.0
        %1634 = vmatprep.subr.mxu0 0.0
        %1635 = vmatpush1.msra.mxu0 0.0
        %1636 = vmatprep.subr.mxu0 0.0
        %1637 = vmatpush1.msra.mxu0 0.0
        %1638 = vmatprep.subr.mxu0 0.0
        %1639 = vmatpush1.msra.mxu0 0.0
        %1640 = vmatprep.subr.mxu0 0.0
        %1641 = vmatpush1.msra.mxu0 0.0
        %1642 = vmatprep.subr.mxu0 0.0
        %1643 = vmatpush1.msra.mxu0 0.0
        %1644 = vmatprep.subr.mxu0 0.0
        %1645 = vmatpush1.msra.mxu0 0.0
        %1646 = vmatprep.subr.mxu0 0.0
        %1647 = vmatpush1.msra.mxu0 0.0
        %1648 = vmatprep.subr.mxu0 0.0
        %1649 = vmatpush1.msra.mxu0 0.0
        %1650 = vmatprep.subr.mxu0 0.0
        %1651 = vmatpush1.msra.mxu0 0.0
        %1652 = vmatprep.subr.mxu0 0.0
        %1653 = vmatpush1.msra.mxu0 0.0
        %1654 = vmatprep.subr.mxu0 0.0
        %1655 = vmatpush1.msra.mxu0 0.0
        %1656 = vmatprep.subr.mxu0 0.0
        %1657 = vmatpush1.msra.mxu0 0.0
        %1658 = vmatprep.subr.mxu0 0.0
        %1659 = vmatpush1.msra.mxu0 0.0
        %1660 = vmatprep.subr.mxu0 0.0
        %1661 = vmatpush1.msra.mxu0 0.0
        %1662 = vmatprep.mubr.f32.mxu0 0.0
        %v1663 = vand.u32 %v1484, 4294901760
        %1664 = vmatmul.mubr.f32.gmra.mrb[0].mxu0 %v1663
        %v1665 = vpop.f32.mrb[0].mxu0
        %v1666 = vadd.f32 %v1564, %v1665
        %v1667 = vpop.f32.mrb[0].mxu0
        %v1668 = vadd.f32 %v1566, %v1667
        %1669 = vdwg.mxu0
        %v1670 = vand.u32 %v325, 4294901760
        %v1671 = vsub.f32 %v325, %v1670
        %1672 = vmatprep.subr.mxu0 %v1671
        %v1673 = vand.u32 %v324, 4294901760
        %v1674 = vsub.f32 %v324, %v1673
        %1675 = vmatpush1.msra.mxu0 %v1674
        %v1676 = vand.u32 %v329, 4294901760
        %v1677 = vsub.f32 %v329, %v1676
        %1678 = vmatprep.subr.mxu0 %v1677
        %v1679 = vand.u32 %v328, 4294901760
        %v1680 = vsub.f32 %v328, %v1679
        %1681 = vmatpush1.msra.mxu0 %v1680
        %v1682 = vand.u32 %v333, 4294901760
        %v1683 = vsub.f32 %v333, %v1682
        %1684 = vmatprep.subr.mxu0 %v1683
        %v1685 = vand.u32 %v332, 4294901760
        %v1686 = vsub.f32 %v332, %v1685
        %1687 = vmatpush1.msra.mxu0 %v1686
        %1688 = vmatprep.subr.mxu0 0.0
        %1689 = vmatpush1.msra.mxu0 0.0
        %1690 = vmatprep.subr.mxu0 0.0
        %1691 = vmatpush1.msra.mxu0 0.0
        %1692 = vmatprep.subr.mxu0 0.0
        %1693 = vmatpush1.msra.mxu0 0.0
        %1694 = vmatprep.subr.mxu0 0.0
        %1695 = vmatpush1.msra.mxu0 0.0
        %1696 = vmatprep.subr.mxu0 0.0
        %1697 = vmatpush1.msra.mxu0 0.0
        %1698 = vmatprep.subr.mxu0 0.0
        %1699 = vmatpush1.msra.mxu0 0.0
        %1700 = vmatprep.subr.mxu0 0.0
        %1701 = vmatpush1.msra.mxu0 0.0
        %1702 = vmatprep.subr.mxu0 0.0
        %1703 = vmatpush1.msra.mxu0 0.0
        %1704 = vmatprep.subr.mxu0 0.0
        %1705 = vmatpush1.msra.mxu0 0.0
        %1706 = vmatprep.subr.mxu0 0.0
        %1707 = vmatpush1.msra.mxu0 0.0
        %1708 = vmatprep.subr.mxu0 0.0
        %1709 = vmatpush1.msra.mxu0 0.0
        %1710 = vmatprep.subr.mxu0 0.0
        %1711 = vmatpush1.msra.mxu0 0.0
        %1712 = vmatprep.subr.mxu0 0.0
        %1713 = vmatpush1.msra.mxu0 0.0
        %1714 = vmatprep.subr.mxu0 0.0
        %1715 = vmatpush1.msra.mxu0 0.0
        %1716 = vmatprep.subr.mxu0 0.0
        %1717 = vmatpush1.msra.mxu0 0.0
        %1718 = vmatprep.subr.mxu0 0.0
        %1719 = vmatpush1.msra.mxu0 0.0
        %1720 = vmatprep.subr.mxu0 0.0
        %1721 = vmatpush1.msra.mxu0 0.0
        %1722 = vmatprep.subr.mxu0 0.0
        %1723 = vmatpush1.msra.mxu0 0.0
        %1724 = vmatprep.subr.mxu0 0.0
        %1725 = vmatpush1.msra.mxu0 0.0
        %1726 = vmatprep.subr.mxu0 0.0
        %1727 = vmatpush1.msra.mxu0 0.0
        %1728 = vmatprep.subr.mxu0 0.0
        %1729 = vmatpush1.msra.mxu0 0.0
        %1730 = vmatprep.subr.mxu0 0.0
        %1731 = vmatpush1.msra.mxu0 0.0
        %1732 = vmatprep.subr.mxu0 0.0
        %1733 = vmatpush1.msra.mxu0 0.0
        %1734 = vmatprep.subr.mxu0 0.0
        %1735 = vmatpush1.msra.mxu0 0.0
        %1736 = vmatprep.subr.mxu0 0.0
        %1737 = vmatpush1.msra.mxu0 0.0
        %1738 = vmatprep.subr.mxu0 0.0
        %1739 = vmatpush1.msra.mxu0 0.0
        %1740 = vmatprep.subr.mxu0 0.0
        %1741 = vmatpush1.msra.mxu0 0.0
        %1742 = vmatprep.subr.mxu0 0.0
        %1743 = vmatpush1.msra.mxu0 0.0
        %1744 = vmatprep.subr.mxu0 0.0
        %1745 = vmatpush1.msra.mxu0 0.0
        %1746 = vmatprep.mubr.f32.mxu0 0.0
        %v1747 = vand.u32 %v1484, 4294901760
        %v1748 = vsub.f32 %v1484, %v1747
        %1749 = vmatmul.mubr.f32.gmra.mrb[0].mxu0 %v1748
        %v1750 = vpop.f32.mrb[0].mxu0
        %v1751 = vadd.f32 %v1666, %v1750
        %v1752 = vpop.f32.mrb[0].mxu0
        %v1753 = vadd.f32 %v1668, %v1752
        %1754 = vdwg.mxu0
        %v1755 = vand.u32 %v325, 4294901760
        %1756 = vmatprep.subr.mxu0 %v1755
        %v1757 = vand.u32 %v324, 4294901760
        %1758 = vmatpush1.msra.mxu0 %v1757
        %v1759 = vand.u32 %v329, 4294901760
        %1760 = vmatprep.subr.mxu0 %v1759
        %v1761 = vand.u32 %v328, 4294901760
        %1762 = vmatpush1.msra.mxu0 %v1761
        %v1763 = vand.u32 %v333, 4294901760
        %1764 = vmatprep.subr.mxu0 %v1763
        %v1765 = vand.u32 %v332, 4294901760
        %1766 = vmatpush1.msra.mxu0 %v1765
        %1767 = vmatprep.subr.mxu0 0.0
        %1768 = vmatpush1.msra.mxu0 0.0
        %1769 = vmatprep.subr.mxu0 0.0
        %1770 = vmatpush1.msra.mxu0 0.0
        %1771 = vmatprep.subr.mxu0 0.0
        %1772 = vmatpush1.msra.mxu0 0.0
        %1773 = vmatprep.subr.mxu0 0.0
        %1774 = vmatpush1.msra.mxu0 0.0
        %1775 = vmatprep.subr.mxu0 0.0
        %1776 = vmatpush1.msra.mxu0 0.0
        %1777 = vmatprep.subr.mxu0 0.0
        %1778 = vmatpush1.msra.mxu0 0.0
        %1779 = vmatprep.subr.mxu0 0.0
        %1780 = vmatpush1.msra.mxu0 0.0
        %1781 = vmatprep.subr.mxu0 0.0
        %1782 = vmatpush1.msra.mxu0 0.0
        %1783 = vmatprep.subr.mxu0 0.0
        %1784 = vmatpush1.msra.mxu0 0.0
        %1785 = vmatprep.subr.mxu0 0.0
        %1786 = vmatpush1.msra.mxu0 0.0
        %1787 = vmatprep.subr.mxu0 0.0
        %1788 = vmatpush1.msra.mxu0 0.0
        %1789 = vmatprep.subr.mxu0 0.0
        %1790 = vmatpush1.msra.mxu0 0.0
        %1791 = vmatprep.subr.mxu0 0.0
        %1792 = vmatpush1.msra.mxu0 0.0
        %1793 = vmatprep.subr.mxu0 0.0
        %1794 = vmatpush1.msra.mxu0 0.0
        %1795 = vmatprep.subr.mxu0 0.0
        %1796 = vmatpush1.msra.mxu0 0.0
        %1797 = vmatprep.subr.mxu0 0.0
        %1798 = vmatpush1.msra.mxu0 0.0
        %1799 = vmatprep.subr.mxu0 0.0
        %1800 = vmatpush1.msra.mxu0 0.0
        %1801 = vmatprep.subr.mxu0 0.0
        %1802 = vmatpush1.msra.mxu0 0.0
        %1803 = vmatprep.subr.mxu0 0.0
        %1804 = vmatpush1.msra.mxu0 0.0
        %1805 = vmatprep.subr.mxu0 0.0
        %1806 = vmatpush1.msra.mxu0 0.0
        %1807 = vmatprep.subr.mxu0 0.0
        %1808 = vmatpush1.msra.mxu0 0.0
        %1809 = vmatprep.subr.mxu0 0.0
        %1810 = vmatpush1.msra.mxu0 0.0
        %1811 = vmatprep.subr.mxu0 0.0
        %1812 = vmatpush1.msra.mxu0 0.0
        %1813 = vmatprep.subr.mxu0 0.0
        %1814 = vmatpush1.msra.mxu0 0.0
        %1815 = vmatprep.subr.mxu0 0.0
        %1816 = vmatpush1.msra.mxu0 0.0
        %1817 = vmatprep.subr.mxu0 0.0
        %1818 = vmatpush1.msra.mxu0 0.0
        %1819 = vmatprep.subr.mxu0 0.0
        %1820 = vmatpush1.msra.mxu0 0.0
        %1821 = vmatprep.subr.mxu0 0.0
        %1822 = vmatpush1.msra.mxu0 0.0
        %1823 = vmatprep.subr.mxu0 0.0
        %1824 = vmatpush1.msra.mxu0 0.0
        %1825 = vmatprep.mubr.f32.mxu0 0.0
        %v1826 = vand.u32 %v1484, 4294901760
        %v1827 = vsub.f32 %v1484, %v1826
        %v1828 = vand.u32 %v1827, 4294901760
        %1829 = vmatmul.mubr.f32.gmra.mrb[0].mxu0 %v1828
        %v1830 = vpop.f32.mrb[0].mxu0
        %v1831 = vadd.f32 %v1751, %v1830
        %v1832 = vpop.f32.mrb[0].mxu0
        %v1833 = vadd.f32 %v1753, %v1832
        %1834 = vdwg.mxu0
        %v1835 = vand.u32 %v325, 4294901760
        %v1836 = vsub.f32 %v325, %v1835
        %v1837 = vand.u32 %v1836, 4294901760
        %1838 = vmatprep.subr.mxu0 %v1837
        %v1839 = vand.u32 %v324, 4294901760
        %v1840 = vsub.f32 %v324, %v1839
        %v1841 = vand.u32 %v1840, 4294901760
        %1842 = vmatpush1.msra.mxu0 %v1841
        %v1843 = vand.u32 %v329, 4294901760
        %v1844 = vsub.f32 %v329, %v1843
        %v1845 = vand.u32 %v1844, 4294901760
        %1846 = vmatprep.subr.mxu0 %v1845
        %v1847 = vand.u32 %v328, 4294901760
        %v1848 = vsub.f32 %v328, %v1847
        %v1849 = vand.u32 %v1848, 4294901760
        %1850 = vmatpush1.msra.mxu0 %v1849
        %v1851 = vand.u32 %v333, 4294901760
        %v1852 = vsub.f32 %v333, %v1851
        %v1853 = vand.u32 %v1852, 4294901760
        %1854 = vmatprep.subr.mxu0 %v1853
        %v1855 = vand.u32 %v332, 4294901760
        %v1856 = vsub.f32 %v332, %v1855
        %v1857 = vand.u32 %v1856, 4294901760
        %1858 = vmatpush1.msra.mxu0 %v1857
        %1859 = vmatprep.subr.mxu0 0.0
        %1860 = vmatpush1.msra.mxu0 0.0
        %1861 = vmatprep.subr.mxu0 0.0
        %1862 = vmatpush1.msra.mxu0 0.0
        %1863 = vmatprep.subr.mxu0 0.0
        %1864 = vmatpush1.msra.mxu0 0.0
        %1865 = vmatprep.subr.mxu0 0.0
        %1866 = vmatpush1.msra.mxu0 0.0
        %1867 = vmatprep.subr.mxu0 0.0
        %1868 = vmatpush1.msra.mxu0 0.0
        %1869 = vmatprep.subr.mxu0 0.0
        %1870 = vmatpush1.msra.mxu0 0.0
        %1871 = vmatprep.subr.mxu0 0.0
        %1872 = vmatpush1.msra.mxu0 0.0
        %1873 = vmatprep.subr.mxu0 0.0
        %1874 = vmatpush1.msra.mxu0 0.0
        %1875 = vmatprep.subr.mxu0 0.0
        %1876 = vmatpush1.msra.mxu0 0.0
        %1877 = vmatprep.subr.mxu0 0.0
        %1878 = vmatpush1.msra.mxu0 0.0
        %1879 = vmatprep.subr.mxu0 0.0
        %1880 = vmatpush1.msra.mxu0 0.0
        %1881 = vmatprep.subr.mxu0 0.0
        %1882 = vmatpush1.msra.mxu0 0.0
        %1883 = vmatprep.subr.mxu0 0.0
        %1884 = vmatpush1.msra.mxu0 0.0
        %1885 = vmatprep.subr.mxu0 0.0
        %1886 = vmatpush1.msra.mxu0 0.0
        %1887 = vmatprep.subr.mxu0 0.0
        %1888 = vmatpush1.msra.mxu0 0.0
        %1889 = vmatprep.subr.mxu0 0.0
        %1890 = vmatpush1.msra.mxu0 0.0
        %1891 = vmatprep.subr.mxu0 0.0
        %1892 = vmatpush1.msra.mxu0 0.0
        %1893 = vmatprep.subr.mxu0 0.0
        %1894 = vmatpush1.msra.mxu0 0.0
        %1895 = vmatprep.subr.mxu0 0.0
        %1896 = vmatpush1.msra.mxu0 0.0
        %1897 = vmatprep.subr.mxu0 0.0
        %1898 = vmatpush1.msra.mxu0 0.0
        %1899 = vmatprep.subr.mxu0 0.0
        %1900 = vmatpush1.msra.mxu0 0.0
        %1901 = vmatprep.subr.mxu0 0.0
        %1902 = vmatpush1.msra.mxu0 0.0
        %1903 = vmatprep.subr.mxu0 0.0
        %1904 = vmatpush1.msra.mxu0 0.0
        %1905 = vmatprep.subr.mxu0 0.0
        %1906 = vmatpush1.msra.mxu0 0.0
        %1907 = vmatprep.subr.mxu0 0.0
        %1908 = vmatpush1.msra.mxu0 0.0
        %1909 = vmatprep.subr.mxu0 0.0
        %1910 = vmatpush1.msra.mxu0 0.0
        %1911 = vmatprep.subr.mxu0 0.0
        %1912 = vmatpush1.msra.mxu0 0.0
        %1913 = vmatprep.subr.mxu0 0.0
        %1914 = vmatpush1.msra.mxu0 0.0
        %1915 = vmatprep.subr.mxu0 0.0
        %1916 = vmatpush1.msra.mxu0 0.0
        %1917 = vmatprep.mubr.f32.mxu0 0.0
        %v1918 = vand.u32 %v1484, 4294901760
        %1919 = vmatmul.mubr.f32.gmra.mrb[0].mxu0 %v1918
        %v1920 = vpop.f32.mrb[0].mxu0
        %v1921 = vadd.f32 %v1831, %v1920
        %v1922 = vpop.f32.mrb[0].mxu0
        %v1923 = vadd.f32 %v1833, %v1922
        %1924 = vdwg.mxu0
        %v1925 = vand.u32 %v325, 4294901760
        %1926 = vmatprep.subr.mxu0 %v1925
        %v1927 = vand.u32 %v324, 4294901760
        %1928 = vmatpush1.msra.mxu0 %v1927
        %v1929 = vand.u32 %v329, 4294901760
        %1930 = vmatprep.subr.mxu0 %v1929
        %v1931 = vand.u32 %v328, 4294901760
        %1932 = vmatpush1.msra.mxu0 %v1931
        %v1933 = vand.u32 %v333, 4294901760
        %1934 = vmatprep.subr.mxu0 %v1933
        %v1935 = vand.u32 %v332, 4294901760
        %1936 = vmatpush1.msra.mxu0 %v1935
        %1937 = vmatprep.subr.mxu0 0.0
        %1938 = vmatpush1.msra.mxu0 0.0
        %1939 = vmatprep.subr.mxu0 0.0
        %1940 = vmatpush1.msra.mxu0 0.0
        %1941 = vmatprep.subr.mxu0 0.0
        %1942 = vmatpush1.msra.mxu0 0.0
        %1943 = vmatprep.subr.mxu0 0.0
        %1944 = vmatpush1.msra.mxu0 0.0
        %1945 = vmatprep.subr.mxu0 0.0
        %1946 = vmatpush1.msra.mxu0 0.0
        %1947 = vmatprep.subr.mxu0 0.0
        %1948 = vmatpush1.msra.mxu0 0.0
        %1949 = vmatprep.subr.mxu0 0.0
        %1950 = vmatpush1.msra.mxu0 0.0
        %1951 = vmatprep.subr.mxu0 0.0
        %1952 = vmatpush1.msra.mxu0 0.0
        %1953 = vmatprep.subr.mxu0 0.0
        %1954 = vmatpush1.msra.mxu0 0.0
        %1955 = vmatprep.subr.mxu0 0.0
        %1956 = vmatpush1.msra.mxu0 0.0
        %1957 = vmatprep.subr.mxu0 0.0
        %1958 = vmatpush1.msra.mxu0 0.0
        %1959 = vmatprep.subr.mxu0 0.0
        %1960 = vmatpush1.msra.mxu0 0.0
        %1961 = vmatprep.subr.mxu0 0.0
        %1962 = vmatpush1.msra.mxu0 0.0
        %1963 = vmatprep.subr.mxu0 0.0
        %1964 = vmatpush1.msra.mxu0 0.0
        %1965 = vmatprep.subr.mxu0 0.0
        %1966 = vmatpush1.msra.mxu0 0.0
        %1967 = vmatprep.subr.mxu0 0.0
        %1968 = vmatpush1.msra.mxu0 0.0
        %1969 = vmatprep.subr.mxu0 0.0
        %1970 = vmatpush1.msra.mxu0 0.0
        %1971 = vmatprep.subr.mxu0 0.0
        %1972 = vmatpush1.msra.mxu0 0.0
        %1973 = vmatprep.subr.mxu0 0.0
        %1974 = vmatpush1.msra.mxu0 0.0
        %1975 = vmatprep.subr.mxu0 0.0
        %1976 = vmatpush1.msra.mxu0 0.0
        %1977 = vmatprep.subr.mxu0 0.0
        %1978 = vmatpush1.msra.mxu0 0.0
        %1979 = vmatprep.subr.mxu0 0.0
        %1980 = vmatpush1.msra.mxu0 0.0
        %1981 = vmatprep.subr.mxu0 0.0
        %1982 = vmatpush1.msra.mxu0 0.0
        %1983 = vmatprep.subr.mxu0 0.0
        %1984 = vmatpush1.msra.mxu0 0.0
        %1985 = vmatprep.subr.mxu0 0.0
        %1986 = vmatpush1.msra.mxu0 0.0
        %1987 = vmatprep.subr.mxu0 0.0
        %1988 = vmatpush1.msra.mxu0 0.0
        %1989 = vmatprep.subr.mxu0 0.0
        %1990 = vmatpush1.msra.mxu0 0.0
        %1991 = vmatprep.subr.mxu0 0.0
        %1992 = vmatpush1.msra.mxu0 0.0
        %1993 = vmatprep.subr.mxu0 0.0
        %1994 = vmatpush1.msra.mxu0 0.0
        %1995 = vmatprep.mubr.f32.mxu0 0.0
        %v1996 = vand.u32 %v1484, 4294901760
        %1997 = vmatmul.mubr.f32.gmra.mrb[0].mxu0 %v1996
        %v1998 = vpop.f32.mrb[0].mxu0
        %v1999 = vadd.f32 %v1921, %v1998
        %v2000 = vpop.f32.mrb[0].mxu0
        %v2001 = vadd.f32 %v1923, %v2000
        %2002 = vdwg.mxu0
        %v2003 = vand.u32 %v327, 4294901760
        %2004 = vmatprep.subr.mxu0 %v2003
        %v2005 = vand.u32 %v326, 4294901760
        %2006 = vmatpush1.msra.mxu0 %v2005
        %v2007 = vand.u32 %v331, 4294901760
        %2008 = vmatprep.subr.mxu0 %v2007
        %v2009 = vand.u32 %v330, 4294901760
        %2010 = vmatpush1.msra.mxu0 %v2009
        %v2011 = vand.u32 %v335, 4294901760
        %2012 = vmatprep.subr.mxu0 %v2011
        %v2013 = vand.u32 %v334, 4294901760
        %2014 = vmatpush1.msra.mxu0 %v2013
        %2015 = vmatprep.subr.mxu0 0.0
        %2016 = vmatpush1.msra.mxu0 0.0
        %2017 = vmatprep.subr.mxu0 0.0
        %2018 = vmatpush1.msra.mxu0 0.0
        %2019 = vmatprep.subr.mxu0 0.0
        %2020 = vmatpush1.msra.mxu0 0.0
        %2021 = vmatprep.subr.mxu0 0.0
        %2022 = vmatpush1.msra.mxu0 0.0
        %2023 = vmatprep.subr.mxu0 0.0
        %2024 = vmatpush1.msra.mxu0 0.0
        %2025 = vmatprep.subr.mxu0 0.0
        %2026 = vmatpush1.msra.mxu0 0.0
        %2027 = vmatprep.subr.mxu0 0.0
        %2028 = vmatpush1.msra.mxu0 0.0
        %2029 = vmatprep.subr.mxu0 0.0
        %2030 = vmatpush1.msra.mxu0 0.0
        %2031 = vmatprep.subr.mxu0 0.0
        %2032 = vmatpush1.msra.mxu0 0.0
        %2033 = vmatprep.subr.mxu0 0.0
        %2034 = vmatpush1.msra.mxu0 0.0
        %2035 = vmatprep.subr.mxu0 0.0
        %2036 = vmatpush1.msra.mxu0 0.0
        %2037 = vmatprep.subr.mxu0 0.0
        %2038 = vmatpush1.msra.mxu0 0.0
        %2039 = vmatprep.subr.mxu0 0.0
        %2040 = vmatpush1.msra.mxu0 0.0
        %2041 = vmatprep.subr.mxu0 0.0
        %2042 = vmatpush1.msra.mxu0 0.0
        %2043 = vmatprep.subr.mxu0 0.0
        %2044 = vmatpush1.msra.mxu0 0.0
        %2045 = vmatprep.subr.mxu0 0.0
        %2046 = vmatpush1.msra.mxu0 0.0
        %2047 = vmatprep.subr.mxu0 0.0
        %2048 = vmatpush1.msra.mxu0 0.0
        %2049 = vmatprep.subr.mxu0 0.0
        %2050 = vmatpush1.msra.mxu0 0.0
        %2051 = vmatprep.subr.mxu0 0.0
        %2052 = vmatpush1.msra.mxu0 0.0
        %2053 = vmatprep.subr.mxu0 0.0
        %2054 = vmatpush1.msra.mxu0 0.0
        %2055 = vmatprep.subr.mxu0 0.0
        %2056 = vmatpush1.msra.mxu0 0.0
        %2057 = vmatprep.subr.mxu0 0.0
        %2058 = vmatpush1.msra.mxu0 0.0
        %2059 = vmatprep.subr.mxu0 0.0
        %2060 = vmatpush1.msra.mxu0 0.0
        %2061 = vmatprep.subr.mxu0 0.0
        %2062 = vmatpush1.msra.mxu0 0.0
        %2063 = vmatprep.subr.mxu0 0.0
        %2064 = vmatpush1.msra.mxu0 0.0
        %2065 = vmatprep.subr.mxu0 0.0
        %2066 = vmatpush1.msra.mxu0 0.0
        %2067 = vmatprep.subr.mxu0 0.0
        %2068 = vmatpush1.msra.mxu0 0.0
        %2069 = vmatprep.subr.mxu0 0.0
        %2070 = vmatpush1.msra.mxu0 0.0
        %2071 = vmatprep.subr.mxu0 0.0
        %2072 = vmatpush1.msra.mxu0 0.0
        %2073 = vmatprep.mubr.f32.mxu0 0.0
        %v2074 = vand.u32 %v1484, 4294901760
        %v2075 = vsub.f32 %v1484, %v2074
        %v2076 = vand.u32 %v2075, 4294901760
        %v2077 = vsub.f32 %v2075, %v2076
        %v2078 = vand.u32 %v2077, 4294901760
        %2079 = vmatmul.mubr.f32.gmra.mrb[0].mxu0 %v2078
        %v2080 = vpop.f32.mrb[0].mxu0
        %v2081 = vadd.f32 %v1447, %v2080
        %v2082 = vpop.f32.mrb[0].mxu0
        %v2083 = vadd.f32 %v1449, %v2082
        %2084 = vdwg.mxu0
        %v2085 = vand.u32 %v327, 4294901760
        %v2086 = vsub.f32 %v327, %v2085
        %v2087 = vand.u32 %v2086, 4294901760
        %v2088 = vsub.f32 %v2086, %v2087
        %v2089 = vand.u32 %v2088, 4294901760
        %2090 = vmatprep.subr.mxu0 %v2089
        %v2091 = vand.u32 %v326, 4294901760
        %v2092 = vsub.f32 %v326, %v2091
        %v2093 = vand.u32 %v2092, 4294901760
        %v2094 = vsub.f32 %v2092, %v2093
        %v2095 = vand.u32 %v2094, 4294901760
        %2096 = vmatpush1.msra.mxu0 %v2095
        %v2097 = vand.u32 %v331, 4294901760
        %v2098 = vsub.f32 %v331, %v2097
        %v2099 = vand.u32 %v2098, 4294901760
        %v2100 = vsub.f32 %v2098, %v2099
        %v2101 = vand.u32 %v2100, 4294901760
        %2102 = vmatprep.subr.mxu0 %v2101
        %v2103 = vand.u32 %v330, 4294901760
        %v2104 = vsub.f32 %v330, %v2103
        %v2105 = vand.u32 %v2104, 4294901760
        %v2106 = vsub.f32 %v2104, %v2105
        %v2107 = vand.u32 %v2106, 4294901760
        %2108 = vmatpush1.msra.mxu0 %v2107
        %v2109 = vand.u32 %v335, 4294901760
        %v2110 = vsub.f32 %v335, %v2109
        %v2111 = vand.u32 %v2110, 4294901760
        %v2112 = vsub.f32 %v2110, %v2111
        %v2113 = vand.u32 %v2112, 4294901760
        %2114 = vmatprep.subr.mxu0 %v2113
        %v2115 = vand.u32 %v334, 4294901760
        %v2116 = vsub.f32 %v334, %v2115
        %v2117 = vand.u32 %v2116, 4294901760
        %v2118 = vsub.f32 %v2116, %v2117
        %v2119 = vand.u32 %v2118, 4294901760
        %2120 = vmatpush1.msra.mxu0 %v2119
        %2121 = vmatprep.subr.mxu0 0.0
        %2122 = vmatpush1.msra.mxu0 0.0
        %2123 = vmatprep.subr.mxu0 0.0
        %2124 = vmatpush1.msra.mxu0 0.0
        %2125 = vmatprep.subr.mxu0 0.0
        %2126 = vmatpush1.msra.mxu0 0.0
        %2127 = vmatprep.subr.mxu0 0.0
        %2128 = vmatpush1.msra.mxu0 0.0
        %2129 = vmatprep.subr.mxu0 0.0
        %2130 = vmatpush1.msra.mxu0 0.0
        %2131 = vmatprep.subr.mxu0 0.0
        %2132 = vmatpush1.msra.mxu0 0.0
        %2133 = vmatprep.subr.mxu0 0.0
        %2134 = vmatpush1.msra.mxu0 0.0
        %2135 = vmatprep.subr.mxu0 0.0
        %2136 = vmatpush1.msra.mxu0 0.0
        %2137 = vmatprep.subr.mxu0 0.0
        %2138 = vmatpush1.msra.mxu0 0.0
        %2139 = vmatprep.subr.mxu0 0.0
        %2140 = vmatpush1.msra.mxu0 0.0
        %2141 = vmatprep.subr.mxu0 0.0
        %2142 = vmatpush1.msra.mxu0 0.0
        %2143 = vmatprep.subr.mxu0 0.0
        %2144 = vmatpush1.msra.mxu0 0.0
        %2145 = vmatprep.subr.mxu0 0.0
        %2146 = vmatpush1.msra.mxu0 0.0
        %2147 = vmatprep.subr.mxu0 0.0
        %2148 = vmatpush1.msra.mxu0 0.0
        %2149 = vmatprep.subr.mxu0 0.0
        %2150 = vmatpush1.msra.mxu0 0.0
        %2151 = vmatprep.subr.mxu0 0.0
        %2152 = vmatpush1.msra.mxu0 0.0
        %2153 = vmatprep.subr.mxu0 0.0
        %2154 = vmatpush1.msra.mxu0 0.0
        %2155 = vmatprep.subr.mxu0 0.0
        %2156 = vmatpush1.msra.mxu0 0.0
        %2157 = vmatprep.subr.mxu0 0.0
        %2158 = vmatpush1.msra.mxu0 0.0
        %2159 = vmatprep.subr.mxu0 0.0
        %2160 = vmatpush1.msra.mxu0 0.0
        %2161 = vmatprep.subr.mxu0 0.0
        %2162 = vmatpush1.msra.mxu0 0.0
        %2163 = vmatprep.subr.mxu0 0.0
        %2164 = vmatpush1.msra.mxu0 0.0
        %2165 = vmatprep.subr.mxu0 0.0
        %2166 = vmatpush1.msra.mxu0 0.0
        %2167 = vmatprep.subr.mxu0 0.0
        %2168 = vmatpush1.msra.mxu0 0.0
        %2169 = vmatprep.subr.mxu0 0.0
        %2170 = vmatpush1.msra.mxu0 0.0
        %2171 = vmatprep.subr.mxu0 0.0
        %2172 = vmatpush1.msra.mxu0 0.0
        %2173 = vmatprep.subr.mxu0 0.0
        %2174 = vmatpush1.msra.mxu0 0.0
        %2175 = vmatprep.subr.mxu0 0.0
        %2176 = vmatpush1.msra.mxu0 0.0
        %2177 = vmatprep.subr.mxu0 0.0
        %2178 = vmatpush1.msra.mxu0 0.0
        %2179 = vmatprep.mubr.f32.mxu0 0.0
        %v2180 = vand.u32 %v1484, 4294901760
        %2181 = vmatmul.mubr.f32.gmra.mrb[0].mxu0 %v2180
        %v2182 = vpop.f32.mrb[0].mxu0
        %v2183 = vadd.f32 %v2081, %v2182
        %v2184 = vpop.f32.mrb[0].mxu0
        %v2185 = vadd.f32 %v2083, %v2184
        %2186 = vdwg.mxu0
        %v2187 = vand.u32 %v327, 4294901760
        %v2188 = vsub.f32 %v327, %v2187
        %2189 = vmatprep.subr.mxu0 %v2188
        %v2190 = vand.u32 %v326, 4294901760
        %v2191 = vsub.f32 %v326, %v2190
        %2192 = vmatpush1.msra.mxu0 %v2191
        %v2193 = vand.u32 %v331, 4294901760
        %v2194 = vsub.f32 %v331, %v2193
        %2195 = vmatprep.subr.mxu0 %v2194
        %v2196 = vand.u32 %v330, 4294901760
        %v2197 = vsub.f32 %v330, %v2196
        %2198 = vmatpush1.msra.mxu0 %v2197
        %v2199 = vand.u32 %v335, 4294901760
        %v2200 = vsub.f32 %v335, %v2199
        %2201 = vmatprep.subr.mxu0 %v2200
        %v2202 = vand.u32 %v334, 4294901760
        %v2203 = vsub.f32 %v334, %v2202
        %2204 = vmatpush1.msra.mxu0 %v2203
        %2205 = vmatprep.subr.mxu0 0.0
        %2206 = vmatpush1.msra.mxu0 0.0
        %2207 = vmatprep.subr.mxu0 0.0
        %2208 = vmatpush1.msra.mxu0 0.0
        %2209 = vmatprep.subr.mxu0 0.0
        %2210 = vmatpush1.msra.mxu0 0.0
        %2211 = vmatprep.subr.mxu0 0.0
        %2212 = vmatpush1.msra.mxu0 0.0
        %2213 = vmatprep.subr.mxu0 0.0
        %2214 = vmatpush1.msra.mxu0 0.0
        %2215 = vmatprep.subr.mxu0 0.0
        %2216 = vmatpush1.msra.mxu0 0.0
        %2217 = vmatprep.subr.mxu0 0.0
        %2218 = vmatpush1.msra.mxu0 0.0
        %2219 = vmatprep.subr.mxu0 0.0
        %2220 = vmatpush1.msra.mxu0 0.0
        %2221 = vmatprep.subr.mxu0 0.0
        %2222 = vmatpush1.msra.mxu0 0.0
        %2223 = vmatprep.subr.mxu0 0.0
        %2224 = vmatpush1.msra.mxu0 0.0
        %2225 = vmatprep.subr.mxu0 0.0
        %2226 = vmatpush1.msra.mxu0 0.0
        %2227 = vmatprep.subr.mxu0 0.0
        %2228 = vmatpush1.msra.mxu0 0.0
        %2229 = vmatprep.subr.mxu0 0.0
        %2230 = vmatpush1.msra.mxu0 0.0
        %2231 = vmatprep.subr.mxu0 0.0
        %2232 = vmatpush1.msra.mxu0 0.0
        %2233 = vmatprep.subr.mxu0 0.0
        %2234 = vmatpush1.msra.mxu0 0.0
        %2235 = vmatprep.subr.mxu0 0.0
        %2236 = vmatpush1.msra.mxu0 0.0
        %2237 = vmatprep.subr.mxu0 0.0
        %2238 = vmatpush1.msra.mxu0 0.0
        %2239 = vmatprep.subr.mxu0 0.0
        %2240 = vmatpush1.msra.mxu0 0.0
        %2241 = vmatprep.subr.mxu0 0.0
        %2242 = vmatpush1.msra.mxu0 0.0
        %2243 = vmatprep.subr.mxu0 0.0
        %2244 = vmatpush1.msra.mxu0 0.0
        %2245 = vmatprep.subr.mxu0 0.0
        %2246 = vmatpush1.msra.mxu0 0.0
        %2247 = vmatprep.subr.mxu0 0.0
        %2248 = vmatpush1.msra.mxu0 0.0
        %2249 = vmatprep.subr.mxu0 0.0
        %2250 = vmatpush1.msra.mxu0 0.0
        %2251 = vmatprep.subr.mxu0 0.0
        %2252 = vmatpush1.msra.mxu0 0.0
        %2253 = vmatprep.subr.mxu0 0.0
        %2254 = vmatpush1.msra.mxu0 0.0
        %2255 = vmatprep.subr.mxu0 0.0
        %2256 = vmatpush1.msra.mxu0 0.0
        %2257 = vmatprep.subr.mxu0 0.0
        %2258 = vmatpush1.msra.mxu0 0.0
        %2259 = vmatprep.subr.mxu0 0.0
        %2260 = vmatpush1.msra.mxu0 0.0
        %2261 = vmatprep.subr.mxu0 0.0
        %2262 = vmatpush1.msra.mxu0 0.0
        %2263 = vmatprep.mubr.f32.mxu0 0.0
        %v2264 = vand.u32 %v1484, 4294901760
        %v2265 = vsub.f32 %v1484, %v2264
        %2266 = vmatmul.mubr.f32.gmra.mrb[0].mxu0 %v2265
        %v2267 = vpop.f32.mrb[0].mxu0
        %v2268 = vadd.f32 %v2183, %v2267
        %v2269 = vpop.f32.mrb[0].mxu0
        %v2270 = vadd.f32 %v2185, %v2269
        %2271 = vdwg.mxu0
        %v2272 = vand.u32 %v327, 4294901760
        %2273 = vmatprep.subr.mxu0 %v2272
        %v2274 = vand.u32 %v326, 4294901760
        %2275 = vmatpush1.msra.mxu0 %v2274
        %v2276 = vand.u32 %v331, 4294901760
        %2277 = vmatprep.subr.mxu0 %v2276
        %v2278 = vand.u32 %v330, 4294901760
        %2279 = vmatpush1.msra.mxu0 %v2278
        %v2280 = vand.u32 %v335, 4294901760
        %2281 = vmatprep.subr.mxu0 %v2280
        %v2282 = vand.u32 %v334, 4294901760
        %2283 = vmatpush1.msra.mxu0 %v2282
        %2284 = vmatprep.subr.mxu0 0.0
        %2285 = vmatpush1.msra.mxu0 0.0
        %2286 = vmatprep.subr.mxu0 0.0
        %2287 = vmatpush1.msra.mxu0 0.0
        %2288 = vmatprep.subr.mxu0 0.0
        %2289 = vmatpush1.msra.mxu0 0.0
        %2290 = vmatprep.subr.mxu0 0.0
        %2291 = vmatpush1.msra.mxu0 0.0
        %2292 = vmatprep.subr.mxu0 0.0
        %2293 = vmatpush1.msra.mxu0 0.0
        %2294 = vmatprep.subr.mxu0 0.0
        %2295 = vmatpush1.msra.mxu0 0.0
        %2296 = vmatprep.subr.mxu0 0.0
        %2297 = vmatpush1.msra.mxu0 0.0
        %2298 = vmatprep.subr.mxu0 0.0
        %2299 = vmatpush1.msra.mxu0 0.0
        %2300 = vmatprep.subr.mxu0 0.0
        %2301 = vmatpush1.msra.mxu0 0.0
        %2302 = vmatprep.subr.mxu0 0.0
        %2303 = vmatpush1.msra.mxu0 0.0
        %2304 = vmatprep.subr.mxu0 0.0
        %2305 = vmatpush1.msra.mxu0 0.0
        %2306 = vmatprep.subr.mxu0 0.0
        %2307 = vmatpush1.msra.mxu0 0.0
        %2308 = vmatprep.subr.mxu0 0.0
        %2309 = vmatpush1.msra.mxu0 0.0
        %2310 = vmatprep.subr.mxu0 0.0
        %2311 = vmatpush1.msra.mxu0 0.0
        %2312 = vmatprep.subr.mxu0 0.0
        %2313 = vmatpush1.msra.mxu0 0.0
        %2314 = vmatprep.subr.mxu0 0.0
        %2315 = vmatpush1.msra.mxu0 0.0
        %2316 = vmatprep.subr.mxu0 0.0
        %2317 = vmatpush1.msra.mxu0 0.0
        %2318 = vmatprep.subr.mxu0 0.0
        %2319 = vmatpush1.msra.mxu0 0.0
        %2320 = vmatprep.subr.mxu0 0.0
        %2321 = vmatpush1.msra.mxu0 0.0
        %2322 = vmatprep.subr.mxu0 0.0
        %2323 = vmatpush1.msra.mxu0 0.0
        %2324 = vmatprep.subr.mxu0 0.0
        %2325 = vmatpush1.msra.mxu0 0.0
        %2326 = vmatprep.subr.mxu0 0.0
        %2327 = vmatpush1.msra.mxu0 0.0
        %2328 = vmatprep.subr.mxu0 0.0
        %2329 = vmatpush1.msra.mxu0 0.0
        %2330 = vmatprep.subr.mxu0 0.0
        %2331 = vmatpush1.msra.mxu0 0.0
        %2332 = vmatprep.subr.mxu0 0.0
        %2333 = vmatpush1.msra.mxu0 0.0
        %2334 = vmatprep.subr.mxu0 0.0
        %2335 = vmatpush1.msra.mxu0 0.0
        %2336 = vmatprep.subr.mxu0 0.0
        %2337 = vmatpush1.msra.mxu0 0.0
        %2338 = vmatprep.subr.mxu0 0.0
        %2339 = vmatpush1.msra.mxu0 0.0
        %2340 = vmatprep.subr.mxu0 0.0
        %2341 = vmatpush1.msra.mxu0 0.0
        %2342 = vmatprep.mubr.f32.mxu0 0.0
        %v2343 = vand.u32 %v1484, 4294901760
        %v2344 = vsub.f32 %v1484, %v2343
        %v2345 = vand.u32 %v2344, 4294901760
        %2346 = vmatmul.mubr.f32.gmra.mrb[0].mxu0 %v2345
        %v2347 = vpop.f32.mrb[0].mxu0
        %v2348 = vadd.f32 %v2268, %v2347
        %v2349 = vpop.f32.mrb[0].mxu0
        %v2350 = vadd.f32 %v2270, %v2349
        %2351 = vdwg.mxu0
        %v2352 = vand.u32 %v327, 4294901760
        %v2353 = vsub.f32 %v327, %v2352
        %v2354 = vand.u32 %v2353, 4294901760
        %2355 = vmatprep.subr.mxu0 %v2354
        %v2356 = vand.u32 %v326, 4294901760
        %v2357 = vsub.f32 %v326, %v2356
        %v2358 = vand.u32 %v2357, 4294901760
        %2359 = vmatpush1.msra.mxu0 %v2358
        %v2360 = vand.u32 %v331, 4294901760
        %v2361 = vsub.f32 %v331, %v2360
        %v2362 = vand.u32 %v2361, 4294901760
        %2363 = vmatprep.subr.mxu0 %v2362
        %v2364 = vand.u32 %v330, 4294901760
        %v2365 = vsub.f32 %v330, %v2364
        %v2366 = vand.u32 %v2365, 4294901760
        %2367 = vmatpush1.msra.mxu0 %v2366
        %v2368 = vand.u32 %v335, 4294901760
        %v2369 = vsub.f32 %v335, %v2368
        %v2370 = vand.u32 %v2369, 4294901760
        %2371 = vmatprep.subr.mxu0 %v2370
        %v2372 = vand.u32 %v334, 4294901760
        %v2373 = vsub.f32 %v334, %v2372
        %v2374 = vand.u32 %v2373, 4294901760
        %2375 = vmatpush1.msra.mxu0 %v2374
        %2376 = vmatprep.subr.mxu0 0.0
        %2377 = vmatpush1.msra.mxu0 0.0
        %2378 = vmatprep.subr.mxu0 0.0
        %2379 = vmatpush1.msra.mxu0 0.0
        %2380 = vmatprep.subr.mxu0 0.0
        %2381 = vmatpush1.msra.mxu0 0.0
        %2382 = vmatprep.subr.mxu0 0.0
        %2383 = vmatpush1.msra.mxu0 0.0
        %2384 = vmatprep.subr.mxu0 0.0
        %2385 = vmatpush1.msra.mxu0 0.0
        %2386 = vmatprep.subr.mxu0 0.0
        %2387 = vmatpush1.msra.mxu0 0.0
        %2388 = vmatprep.subr.mxu0 0.0
        %2389 = vmatpush1.msra.mxu0 0.0
        %2390 = vmatprep.subr.mxu0 0.0
        %2391 = vmatpush1.msra.mxu0 0.0
        %2392 = vmatprep.subr.mxu0 0.0
        %2393 = vmatpush1.msra.mxu0 0.0
        %2394 = vmatprep.subr.mxu0 0.0
        %2395 = vmatpush1.msra.mxu0 0.0
        %2396 = vmatprep.subr.mxu0 0.0
        %2397 = vmatpush1.msra.mxu0 0.0
        %2398 = vmatprep.subr.mxu0 0.0
        %2399 = vmatpush1.msra.mxu0 0.0
        %2400 = vmatprep.subr.mxu0 0.0
        %2401 = vmatpush1.msra.mxu0 0.0
        %2402 = vmatprep.subr.mxu0 0.0
        %2403 = vmatpush1.msra.mxu0 0.0
        %2404 = vmatprep.subr.mxu0 0.0
        %2405 = vmatpush1.msra.mxu0 0.0
        %2406 = vmatprep.subr.mxu0 0.0
        %2407 = vmatpush1.msra.mxu0 0.0
        %2408 = vmatprep.subr.mxu0 0.0
        %2409 = vmatpush1.msra.mxu0 0.0
        %2410 = vmatprep.subr.mxu0 0.0
        %2411 = vmatpush1.msra.mxu0 0.0
        %2412 = vmatprep.subr.mxu0 0.0
        %2413 = vmatpush1.msra.mxu0 0.0
        %2414 = vmatprep.subr.mxu0 0.0
        %2415 = vmatpush1.msra.mxu0 0.0
        %2416 = vmatprep.subr.mxu0 0.0
        %2417 = vmatpush1.msra.mxu0 0.0
        %2418 = vmatprep.subr.mxu0 0.0
        %2419 = vmatpush1.msra.mxu0 0.0
        %2420 = vmatprep.subr.mxu0 0.0
        %2421 = vmatpush1.msra.mxu0 0.0
        %2422 = vmatprep.subr.mxu0 0.0
        %2423 = vmatpush1.msra.mxu0 0.0
        %2424 = vmatprep.subr.mxu0 0.0
        %2425 = vmatpush1.msra.mxu0 0.0
        %2426 = vmatprep.subr.mxu0 0.0
        %2427 = vmatpush1.msra.mxu0 0.0
        %2428 = vmatprep.subr.mxu0 0.0
        %2429 = vmatpush1.msra.mxu0 0.0
        %2430 = vmatprep.subr.mxu0 0.0
        %2431 = vmatpush1.msra.mxu0 0.0
        %2432 = vmatprep.subr.mxu0 0.0
        %2433 = vmatpush1.msra.mxu0 0.0
        %2434 = vmatprep.mubr.f32.mxu0 0.0
        %v2435 = vand.u32 %v1484, 4294901760
        %2436 = vmatmul.mubr.f32.gmra.mrb[0].mxu0 %v2435
        %v2437 = vpop.f32.mrb[0].mxu0
        %v2438 = vadd.f32 %v2348, %v2437
        %v2439 = vpop.f32.mrb[0].mxu0
        %v2440 = vadd.f32 %v2350, %v2439
        %2441 = vdwg.mxu0
        %v2442 = vand.u32 %v327, 4294901760
        %2443 = vmatprep.subr.mxu0 %v2442
        %v2444 = vand.u32 %v326, 4294901760
        %2445 = vmatpush1.msra.mxu0 %v2444
        %v2446 = vand.u32 %v331, 4294901760
        %2447 = vmatprep.subr.mxu0 %v2446
        %v2448 = vand.u32 %v330, 4294901760
        %2449 = vmatpush1.msra.mxu0 %v2448
        %v2450 = vand.u32 %v335, 4294901760
        %2451 = vmatprep.subr.mxu0 %v2450
        %v2452 = vand.u32 %v334, 4294901760
        %2453 = vmatpush1.msra.mxu0 %v2452
        %2454 = vmatprep.subr.mxu0 0.0
        %2455 = vmatpush1.msra.mxu0 0.0
        %2456 = vmatprep.subr.mxu0 0.0
        %2457 = vmatpush1.msra.mxu0 0.0
        %2458 = vmatprep.subr.mxu0 0.0
        %2459 = vmatpush1.msra.mxu0 0.0
        %2460 = vmatprep.subr.mxu0 0.0
        %2461 = vmatpush1.msra.mxu0 0.0
        %2462 = vmatprep.subr.mxu0 0.0
        %2463 = vmatpush1.msra.mxu0 0.0
        %2464 = vmatprep.subr.mxu0 0.0
        %2465 = vmatpush1.msra.mxu0 0.0
        %2466 = vmatprep.subr.mxu0 0.0
        %2467 = vmatpush1.msra.mxu0 0.0
        %2468 = vmatprep.subr.mxu0 0.0
        %2469 = vmatpush1.msra.mxu0 0.0
        %2470 = vmatprep.subr.mxu0 0.0
        %2471 = vmatpush1.msra.mxu0 0.0
        %2472 = vmatprep.subr.mxu0 0.0
        %2473 = vmatpush1.msra.mxu0 0.0
        %2474 = vmatprep.subr.mxu0 0.0
        %2475 = vmatpush1.msra.mxu0 0.0
        %2476 = vmatprep.subr.mxu0 0.0
        %2477 = vmatpush1.msra.mxu0 0.0
        %2478 = vmatprep.subr.mxu0 0.0
        %2479 = vmatpush1.msra.mxu0 0.0
        %2480 = vmatprep.subr.mxu0 0.0
        %2481 = vmatpush1.msra.mxu0 0.0
        %2482 = vmatprep.subr.mxu0 0.0
        %2483 = vmatpush1.msra.mxu0 0.0
        %2484 = vmatprep.subr.mxu0 0.0
        %2485 = vmatpush1.msra.mxu0 0.0
        %2486 = vmatprep.subr.mxu0 0.0
        %2487 = vmatpush1.msra.mxu0 0.0
        %2488 = vmatprep.subr.mxu0 0.0
        %2489 = vmatpush1.msra.mxu0 0.0
        %2490 = vmatprep.subr.mxu0 0.0
        %2491 = vmatpush1.msra.mxu0 0.0
        %2492 = vmatprep.subr.mxu0 0.0
        %2493 = vmatpush1.msra.mxu0 0.0
        %2494 = vmatprep.subr.mxu0 0.0
        %2495 = vmatpush1.msra.mxu0 0.0
        %2496 = vmatprep.subr.mxu0 0.0
        %2497 = vmatpush1.msra.mxu0 0.0
        %2498 = vmatprep.subr.mxu0 0.0
        %2499 = vmatpush1.msra.mxu0 0.0
        %2500 = vmatprep.subr.mxu0 0.0
        %2501 = vmatpush1.msra.mxu0 0.0
        %2502 = vmatprep.subr.mxu0 0.0
        %2503 = vmatpush1.msra.mxu0 0.0
        %2504 = vmatprep.subr.mxu0 0.0
        %2505 = vmatpush1.msra.mxu0 0.0
        %2506 = vmatprep.subr.mxu0 0.0
        %2507 = vmatpush1.msra.mxu0 0.0
        %2508 = vmatprep.subr.mxu0 0.0
        %2509 = vmatpush1.msra.mxu0 0.0
        %2510 = vmatprep.subr.mxu0 0.0
        %2511 = vmatpush1.msra.mxu0 0.0
        %2512 = vmatprep.mubr.f32.mxu0 0.0
        %v2513 = vand.u32 %v1484, 4294901760
        %2514 = vmatmul.mubr.f32.gmra.mrb[0].mxu0 %v2513
        %v2515 = vpop.f32.mrb[0].mxu0
        %v2516 = vadd.f32 %v2438, %v2515
        %v2517 = vpop.f32.mrb[0].mxu0
        %v2518 = vadd.f32 %v2440, %v2517
        %2519 = vdwg.mxu0
        %2520 = vst [vmem:[%s246] sm:$0xff] %v1999
        %2521 = vst [vmem:[%s246 + $0x8] sm:$0xff] %v2001
        %2522 = vst [vmem:[%s246 + $0x10] sm:$0xff] %v2516
        %2523 = vst [vmem:[%s246 + $0x18] sm:$0xff] %v2518
        %s2524 = sand.u32 %s137, 1
        %s2525 = scalar_lea.sflag [#allocation6], %s2524
        %s2526 = sand.u32 %s137, 1
        %s2527 = smul.addr %s2526, 32
        %s2528 = scalar_lea.vmem [#allocation5], %s2527
        // Predicated region
        $region33: #{tpu_custom_call.1} parent=31 // pred_check
          %p2529 = pneg %p147
        $region34: #{tpu_custom_call.1} parent=31 // pred_check_branch
          %2531 = sbr.rel (%p2529) target = $region36
        $region35: #{tpu_custom_call.1} parent=31 // pred_region
          %s2532 = smul.u32 4, %s34
          %s2533 = ssub.s32 6, %s2532
          %p2534 = scmp.lt.s32.totalorder %s2533, 4
          %s2535 = scalar_select %p2534, %s2533, 4
          %s2536 = smul.u32 128, %s2535
          %s2538 = ssub.s32 512, %s2536
          %2539 = vsyncadd %s2525, %s2538
          %p2540 = scmp.ne.s32.totalorder 0, %s2536
          %s2541 = smul.addr %s33, 6
          %s2542 = sadd.s32 %s2532, %s2541
          %s2543 = smul.addr %s2542, 128
          %s2544 = scalar_lea.hbm %s5, %s2543
          %s2545 = smul.u32 %s2535, 8
          %s2546 = sshll.u32 %s2545, 4
          %s2547 = sshll.u32 %s2528, 4
          %s2548 = int_to_ptr.vmem [resolvable:$true] %s2547
          %2550 = dma.vmem_to_hbm [thread:$0]  (%p2540), %s2548, %s2546, %s2544, %s2525
        $region36: #{tpu_custom_call.1} parent=31 // pred_fallthru
          _
      $region32: #{tpu_custom_call.1} parent=5 // pred_fallthru
        _
      %p2551 = scmp.le.s32.totalorder 2, %s24
      // Predicated region
      $region37: #{tpu_custom_call.1} parent=5 // pred_check
        %p2552 = pneg %p2551
      $region38: #{tpu_custom_call.1} parent=5 // pred_check_branch
        %2554 = sbr.rel (%p2552) target = $region40
      $region39: #{tpu_custom_call.1} parent=5 // pred_region
        %s2555 = ssub.s32 %s24, 2
        // Predicated region
        $region41: #{tpu_custom_call.1} parent=39 // pred_check
          %p2556 = pneg %p153
        $region42: #{tpu_custom_call.1} parent=39 // pred_check_branch
          %2558 = sbr.rel (%p2556) target = $region44
        $region43: #{tpu_custom_call.1} parent=39 // pred_region
          %s2559 = sand.u32 %s138, 1
          %s2560 = scalar_lea.sflag [#allocation6], %s2559
          %s2561 = sand.u32 %s138, 1
          %s2562 = smul.addr %s2561, 32
          %s2563 = scalar_lea.vmem [#allocation5], %s2562
          %2564 = dma.done %s2560, 512
        $region44: #{tpu_custom_call.1} parent=39 // pred_fallthru
          _
      $region40: #{tpu_custom_call.1} parent=5 // pred_fallthru
        _
    $region6: #{tpu_custom_call.1} parent=1 // loop_footer
      %s28 = sadd.s32 1, %s24
    $region7: #{tpu_custom_call.1} parent=1 // loop_footer_branch
      %23 = sbr.rel target = $region3
    $region8: #{tpu_custom_call.1} parent=1 // loop_exit
      _
    %2565 = vsyncpa [#allocation6], 1
    %s2566 = scalar_lea.sflag [#allocation6], 1
    %2567 = vsyncpa %s2566, 1

</llo_original>
